<compile_context>
chip_gen: v5e
topology: v5e:2x2
jax: 0.10.0
libtpu: 0.0.40
codegen_flags: <defaults>
</compile_context>

<pallas_src>
import functools

import jax
import jax.numpy as jnp
from jax.experimental import pallas as pl
from jax.experimental.pallas import tpu as pltpu

_VMEM = pltpu.MemorySpace.VMEM
_SMEM = pltpu.MemorySpace.SMEM

_LOSS_LANES = 128          # lane-dense loss row; lanes 0..3 hold [recon, cross, kld, dist]
_NEG_BIG = -1.0e30         # bias filler for padded classifier columns


def _round_up(x, m):
    return (x + m - 1) // m * m


def _mm(x, w):
    """MXU matmul: bf16 operands, f32 accumulation."""
    return jnp.dot(x.astype(jnp.bfloat16), w.astype(jnp.bfloat16),
                   preferred_element_type=jnp.float32)


# --------------------------------------------------------------------------- #
# Fused kernel
# --------------------------------------------------------------------------- #
def _fused_cada_vae_kernel(
        # -------- pipelined (tiled over img_dim) inputs --------
        img_ref,        # (B, Tk)   column tile t of img
        ei_w1_ref,      # (Tk, Hi)  K-tile of img-encoder layer 1 (phase 0)
        di_w2_ref,      # (Hi, Tk)  N-tile of img-decoder output layer (phase 1)
        di_b2_ref,      # (1, Tk)
        # -------- resident (full-array) inputs --------
        att_ref, eps_img_ref, eps_att_ref,
        ei_b1_ref, ei_wmu_ref, ei_bmu_ref, ei_wlv_ref, ei_blv_ref,
        ea_w1_ref, ea_b1_ref, ea_wmu_ref, ea_bmu_ref, ea_wlv_ref, ea_blv_ref,
        di_w1_ref, di_b1_ref,
        da_w1_ref, da_b1_ref, da_w2_ref, da_b2_ref,
        clf_w_ref, clf_b_ref,
        # -------- outputs --------
        logp_ref,       # (B, C_pad)       VMEM, lane-dense
        loss_ref,       # (1, _LOSS_LANES) VMEM, lanes 0..3 = [recon, cross, kld, dist]
        # -------- scratch --------
        acc_h_ref,      # (B, Hi)  f32  img-encoder pre-activation accumulator
        hdi_ref,        # (2B, Hi) bf16 img-decoder hidden, reused across N tiles
        lacc_ref,       # (4,)     f32  SMEM loss accumulators
        *, batch, reco_loss):
    p = pl.program_id(0)      # 0: encoder K-reduction phase, 1: decoder N-tile phase
    t = pl.program_id(1)      # tile index over img_dim
    n_t = pl.num_programs(1)

    if reco_loss == "l1":
        def _err(x):
            return jnp.sum(jnp.abs(x))
    else:  # 'l2'  (MSELoss(size_average=False))
        def _err(x):
            return jnp.sum(x * x)

    # ---- phase 0: accumulate img-encoder pre-activation over K tiles ------- #
    @pl.when(p == 0)
    def _():
        @pl.when(t == 0)
        def _():
            acc_h_ref[...] = jnp.zeros_like(acc_h_ref)
        acc_h_ref[...] += jnp.dot(img_ref[...].astype(jnp.bfloat16),
                                  ei_w1_ref[...],
                                  preferred_element_type=jnp.float32)

    # ---- phase transition (p==1, t==0): all the small, un-tiled compute ----- #
    @pl.when(jnp.logical_and(p == 1, t == 0))
    def _():
        att = att_ref[...]

        # Encoders. mu / logvar heads kept separate -> no unaligned lane slices.
        h_img = jnp.maximum(acc_h_ref[...] + ei_b1_ref[...], 0.0)
        mu_img = _mm(h_img, ei_wmu_ref[...]) + ei_bmu_ref[...]
        lv_img = _mm(h_img, ei_wlv_ref[...]) + ei_blv_ref[...]

        h_att = jnp.maximum(_mm(att, ea_w1_ref[...]) + ea_b1_ref[...], 0.0)
        mu_att = _mm(h_att, ea_wmu_ref[...]) + ea_bmu_ref[...]
        lv_att = _mm(h_att, ea_wlv_ref[...]) + ea_blv_ref[...]

        # Reparameterize: sigma = exp(logvar); eps is (B,1), broadcast over latent
        # dims exactly like the reference's eps.expand(sigma.size()).
        z_img = mu_img + jnp.exp(lv_img) * eps_img_ref[...]
        z_att = mu_att + jnp.exp(lv_att) * eps_att_ref[...]
        z_cat = jnp.concatenate([z_img, z_att], axis=0)            # (2B, L)

        # img-decoder hidden for BOTH z's; kept (bf16) for the tiled output matmul.
        hdi_ref[...] = jnp.maximum(
            _mm(z_cat, di_w1_ref[...]) + di_b1_ref[...], 0.0).astype(jnp.bfloat16)

        # Attribute decoder is small: run it fully here on the 2B rows.
        h_da = jnp.maximum(_mm(z_cat, da_w1_ref[...]) + da_b1_ref[...], 0.0)
        rec_att = _mm(h_da, da_w2_ref[...]) + da_b2_ref[...]       # (2B, Datt)
        # rows [:B] come from z_img (cross), rows [B:] from z_att (reconstruction)
        recon_att = _err(rec_att[batch:, :] - att)
        cross_att = _err(rec_att[:batch, :] - att)

        kld = (0.5 * jnp.sum(1.0 + lv_att - mu_att * mu_att - jnp.exp(lv_att))
               + 0.5 * jnp.sum(1.0 + lv_img - mu_img * mu_img - jnp.exp(lv_img)))
        sd = (jnp.sum((mu_img - mu_att) ** 2, axis=1, keepdims=True)
              + jnp.sum((jnp.exp(0.5 * lv_img) - jnp.exp(0.5 * lv_att)) ** 2,
                        axis=1, keepdims=True))
        dist = jnp.sum(jnp.sqrt(sd))

        lacc_ref[0] = recon_att
        lacc_ref[1] = cross_att
        lacc_ref[2] = kld
        lacc_ref[3] = dist

        # LINEAR_LOGSOFTMAX head on z_from_img. Class dim is lane-padded; padded
        # columns carry a -1e30 bias so they vanish under exp() in the softmax.
        logits = _mm(z_img, clf_w_ref[...]) + clf_b_ref[...]
        m = jnp.max(logits, axis=1, keepdims=True)
        s = logits - m
        lse = jnp.log(jnp.sum(jnp.exp(s), axis=1, keepdims=True))
        logp_ref[...] = (s - lse).astype(logp_ref.dtype)

    # ---- phase 1: per-tile img reconstruction + loss accumulation ----------- #
    @pl.when(p == 1)
    def _():
        rec_t = (jnp.dot(hdi_ref[...], di_w2_ref[...],
                         preferred_element_type=jnp.float32)
                 + di_b2_ref[...])                                  # (2B, Tk)
        img_t = img_ref[...]                                        # (B, Tk)
        # rows [:B] <- z_img (reconstruction), rows [B:] <- z_att (cross)
        lacc_ref[0] += _err(rec_t[:batch, :] - img_t)
        lacc_ref[1] += _err(rec_t[batch:, :] - img_t)

        @pl.when(t == n_t - 1)
        def _():
            lane = jax.lax.broadcasted_iota(jnp.int32, (1, _LOSS_LANES), 1)
            row = (jnp.where(lane == 0, lacc_ref[0], 0.0)
                   + jnp.where(lane == 1, lacc_ref[1], 0.0)
                   + jnp.where(lane == 2, lacc_ref[2], 0.0)
                   + jnp.where(lane == 3, lacc_ref[3], 0.0))
            loss_ref[...] = row


# --------------------------------------------------------------------------- #
# Wrapper
# --------------------------------------------------------------------------- #
def fused_cada_vae_forward(img, att, eps_img, eps_att, params, *,
                           num_classes, tile=None, reco_loss="l2"):
    """One fused pipelined launch. Returns (log_probs, recon, cross, kld, dist)."""
    (ei_w1, ei_b1, ei_wmu, ei_bmu, ei_wlv, ei_blv,
     ea_w1, ea_b1, ea_wmu, ea_bmu, ea_wlv, ea_blv,
     di_w1, di_b1, di_w2, di_b2,
     da_w1, da_b1, da_w2, da_b2,
     clf_w, clf_b) = params

    B, img_dim = img.shape
    hidden_img = ei_w1.shape[1]

    if tile is None:
        tile = min(img_dim, 512)
    assert img_dim % tile == 0 and tile % 128 == 0, (img_dim, tile)
    n_t = img_dim // tile

    # Lane-dense classifier output: pad the class dim to a multiple of 128.
    c_pad = _round_up(num_classes, 128)
    if c_pad != num_classes:
        clf_w = jnp.pad(clf_w, ((0, 0), (0, c_pad - num_classes)))
        clf_b = jnp.pad(clf_b, ((0, 0), (0, c_pad - num_classes)),
                        constant_values=_NEG_BIG)

    kernel = functools.partial(_fused_cada_vae_kernel,
                               batch=B, reco_loss=reco_loss)

    full_inputs = (att, eps_img, eps_att,
                   ei_b1, ei_wmu, ei_bmu, ei_wlv, ei_blv,
                   ea_w1, ea_b1, ea_wmu, ea_bmu, ea_wlv, ea_blv,
                   di_w1, di_b1,
                   da_w1, da_b1, da_w2, da_b2,
                   clf_w, clf_b)

    def _full(x):
        return pl.BlockSpec(x.shape, lambda p, t: (0, 0))

    in_specs = [
        # img column tile: used in phase 0 (encoder K-tile) AND phase 1 (loss).
        pl.BlockSpec((B, tile), lambda p, t: (0, t)),
        # ei_w1: K-tile t during phase 0; parked on the last tile during phase 1
        # (no redundant re-DMA after the phase transition).
        pl.BlockSpec((tile, hidden_img),
                     lambda p, t: ((1 - p) * t + p * (n_t - 1), 0)),
        # di_w2 / di_b2: column tile 0 prefetched during phase 0, tile t in phase 1.
        pl.BlockSpec((hidden_img, tile), lambda p, t: (0, p * t)),
        pl.BlockSpec((1, tile), lambda p, t: (0, p * t)),
    ] + [_full(x) for x in full_inputs]

    out_specs = (
        pl.BlockSpec((B, c_pad), lambda p, t: (0, 0)),
        pl.BlockSpec((1, _LOSS_LANES), lambda p, t: (0, 0)),
    )
    out_shape = (jax.ShapeDtypeStruct((B, c_pad), jnp.float32),
                 jax.ShapeDtypeStruct((1, _LOSS_LANES), jnp.float32))

    scratch_shapes = [
        pltpu.VMEM((B, hidden_img), jnp.float32),        # encoder accumulator
        pltpu.VMEM((2 * B, hidden_img), jnp.bfloat16),   # decoder hidden (2B rows)
        pltpu.SMEM((4,), jnp.float32),                   # loss accumulators
    ]

    call_args = (img, ei_w1, di_w2, di_b2) + full_inputs
    att_dim = att.shape[1]
    hidden_att = ea_w1.shape[1]
    latent = ei_wmu.shape[1]
    flops = (2 * B * (img_dim * hidden_img + 2 * hidden_img * latent
                      + att_dim * hidden_att + 2 * hidden_att * latent
                      + latent * c_pad)
             + 2 * (2 * B) * (latent * hidden_img + hidden_img * img_dim
                              + latent * hidden_att + hidden_att * att_dim))
    bytes_accessed = (sum(int(a.size) * a.dtype.itemsize for a in call_args)
                      + B * c_pad * 4 + _LOSS_LANES * 4)
    transcendentals = B * (8 * latent + c_pad)

    log_probs, losses = pl.pallas_call(
        kernel,
        out_shape=out_shape,
        grid_spec=pltpu.PrefetchScalarGridSpec(
            num_scalar_prefetch=0,
            grid=(2, n_t),
            in_specs=in_specs,
            out_specs=out_specs,
            scratch_shapes=scratch_shapes),
        compiler_params=pltpu.CompilerParams(
            dimension_semantics=("arbitrary", "arbitrary"),
            vmem_limit_bytes=48 * 1024 * 1024),
        cost_estimate=pl.CostEstimate(flops=flops,
                                      transcendentals=transcendentals,
                                      bytes_accessed=bytes_accessed),
    )(*call_args)

    return (log_probs[:, :num_classes],
            losses[0, 0], losses[0, 1], losses[0, 2], losses[0, 3])


# --------------------------------------------------------------------------- #
# Pure-JAX reference (same bf16 matmul convention) for a sanity check
# --------------------------------------------------------------------------- #
def reference_forward(img, att, eps_img, eps_att, params, *, reco_loss="l2"):
    (ei_w1, ei_b1, ei_wmu, ei_bmu, ei_wlv, ei_blv,
     ea_w1, ea_b1, ea_wmu, ea_bmu, ea_wlv, ea_blv,
     di_w1, di_b1, di_w2, di_b2,
     da_w1, da_b1, da_w2, da_b2,
     clf_w, clf_b) = params
    err = ((lambda x: jnp.sum(jnp.abs(x))) if reco_loss == "l1"
           else (lambda x: jnp.sum(x * x)))

    h_img = jax.nn.relu(_mm(img, ei_w1) + ei_b1)
    mu_i = _mm(h_img, ei_wmu) + ei_bmu
    lv_i = _mm(h_img, ei_wlv) + ei_blv
    h_att = jax.nn.relu(_mm(att, ea_w1) + ea_b1)
    mu_a = _mm(h_att, ea_wmu) + ea_bmu
    lv_a = _mm(h_att, ea_wlv) + ea_blv
    z_i = mu_i + jnp.exp(lv_i) * eps_img
    z_a = mu_a + jnp.exp(lv_a) * eps_att

    dec_img = lambda z: _mm(jax.nn.relu(_mm(z, di_w1) + di_b1), di_w2) + di_b2
    dec_att = lambda z: _mm(jax.nn.relu(_mm(z, da_w1) + da_b1), da_w2) + da_b2
    recon = err(dec_img(z_i) - img) + err(dec_att(z_a) - att)
    cross = err(dec_img(z_a) - img) + err(dec_att(z_i) - att)
    kld = (0.5 * jnp.sum(1.0 + lv_a - mu_a ** 2 - jnp.exp(lv_a))
           + 0.5 * jnp.sum(1.0 + lv_i - mu_i ** 2 - jnp.exp(lv_i)))
    dist = jnp.sum(jnp.sqrt(jnp.sum((mu_i - mu_a) ** 2, axis=1)
                            + jnp.sum((jnp.exp(0.5 * lv_i)
                                       - jnp.exp(0.5 * lv_a)) ** 2, axis=1)))
    logp = jax.nn.log_softmax(_mm(z_i, clf_w) + clf_b, axis=1)
    return logp, recon, cross, kld, dist


# --------------------------------------------------------------------------- #
# Main
# --------------------------------------------------------------------------- #
if __name__ == "__main__":
    key = jax.random.PRNGKey(0)

    # Small, shape-consistent stand-ins for the real dataset dimensions.
    batch = 8
    img_dim = 256          # stand-in for the 2048-d resnet features
    att_dim = 64           # stand-in for the auxiliary (attribute) features
    hidden_img = 128       # hidden_size_rule['resnet_features'][0]
    hidden_att = 64        # hidden_size_rule[aux][0]
    latent = 16            # latent_size
    num_classes = 32       # e.g. APY
    tile = 128             # img_dim tile -> grid (2, 2); use 512 at real dims

    keys = jax.random.split(key, 20)

    def init_linear(k, d_in, d_out, scale=0.05):
        kw, kb = jax.random.split(k)
        w = (scale * jax.random.normal(kw, (d_in, d_out), jnp.float32)
             ).astype(jnp.bfloat16)
        b = scale * jax.random.normal(kb, (1, d_out), jnp.float32)
        return w, b

    ei_w1, ei_b1 = init_linear(keys[0], img_dim, hidden_img)
    ei_wmu, ei_bmu = init_linear(keys[1], hidden_img, latent)
    ei_wlv, ei_blv = init_linear(keys[2], hidden_img, latent)
    ea_w1, ea_b1 = init_linear(keys[3], att_dim, hidden_att)
    ea_wmu, ea_bmu = init_linear(keys[4], hidden_att, latent)
    ea_wlv, ea_blv = init_linear(keys[5], hidden_att, latent)
    di_w1, di_b1 = init_linear(keys[6], latent, hidden_img)
    di_w2, di_b2 = init_linear(keys[7], hidden_img, img_dim)
    da_w1, da_b1 = init_linear(keys[8], latent, hidden_att)
    da_w2, da_b2 = init_linear(keys[9], hidden_att, att_dim)
    clf_w, clf_b = init_linear(keys[10], latent, num_classes)

    img = jax.random.normal(keys[11], (batch, img_dim), jnp.float32)
    att = jax.random.normal(keys[12], (batch, att_dim), jnp.float32)
    # per-sample noise, broadcast over latent dims (matches the reference exactly)
    eps_img = jax.random.normal(keys[13], (batch, 1), jnp.float32)
    eps_att = jax.random.normal(keys[14], (batch, 1), jnp.float32)

    params = (ei_w1, ei_b1, ei_wmu, ei_bmu, ei_wlv, ei_blv,
              ea_w1, ea_b1, ea_wmu, ea_bmu, ea_wlv, ea_blv,
              di_w1, di_b1, di_w2, di_b2,
              da_w1, da_b1, da_w2, da_b2,
              clf_w, clf_b)

    # ---- trainstep forward path (one fused, pipelined launch) -------------- #
    log_probs, recon, cross, kld, dist = fused_cada_vae_forward(
        img, att, eps_img, eps_att, params,
        num_classes=num_classes, tile=tile, reco_loss="l2")
    jax.block_until_ready(log_probs)

    # ---- sanity check against pure-JAX reference --------------------------- #
    r_logp, r_recon, r_cross, r_kld, r_dist = reference_forward(
        img, att, eps_img, eps_att, params, reco_loss="l2")
    assert jnp.allclose(log_probs, r_logp, rtol=2e-2, atol=5e-2)
    for a, b in ((recon, r_recon), (cross, r_cross), (kld, r_kld), (dist, r_dist)):
        assert jnp.allclose(a, b, rtol=5e-2, atol=5e-2), (a, b)

    # Warmup schedule (host-side scalars, exactly like the PyTorch code).
    current_epoch = 5
    warmup = {
        "cross_reconstruction": {"start_epoch": 1, "end_epoch": 10, "factor": 2.37},
        "beta": {"start_epoch": 0, "end_epoch": 20, "factor": 0.25},
        "distance": {"start_epoch": 2, "end_epoch": 15, "factor": 8.13},
    }

    def warm(name):
        w = warmup[name]
        f = (current_epoch - w["start_epoch"]) / float(w["end_epoch"] - w["start_epoch"])
        f = f * w["factor"]
        return min(max(f, 0.0), w["factor"])

    cross_reconstruction_factor = warm("cross_reconstruction")
    beta = warm("beta")
    distance_factor = warm("distance")

    loss = recon - beta * kld
    loss = loss + jnp.where(cross > 0, cross_reconstruction_factor * cross, 0.0)
    if distance_factor > 0:
        loss = loss + distance_factor * dist

    loss = jax.block_until_ready(loss)
    log_probs = jax.block_until_ready(log_probs)

    assert log_probs.shape == (batch, num_classes)
    # log_softmax rows must (approximately) sum to 1 in prob space.
    assert jnp.allclose(jnp.sum(jnp.exp(log_probs), axis=1), 1.0, atol=1e-4)
    assert jnp.isfinite(loss)

    print("KERNEL_OK")
</pallas_src>

<mosaic_0001>
module attributes {stable_mosaic.version = 11 : i64} {
  func.func @_fused_cada_vae_kernel(%arg0: i32, %arg1: i32, %arg2: memref<8x128xf32, #tpu.memory_space<vmem>>, %arg3: memref<128x128xbf16, #tpu.memory_space<vmem>>, %arg4: memref<128x128xbf16, #tpu.memory_space<vmem>>, %arg5: memref<1x128xf32, #tpu.memory_space<vmem>>, %arg6: memref<8x64xf32, #tpu.memory_space<vmem>>, %arg7: memref<8x1xf32, #tpu.memory_space<vmem>>, %arg8: memref<8x1xf32, #tpu.memory_space<vmem>>, %arg9: memref<1x128xf32, #tpu.memory_space<vmem>>, %arg10: memref<128x16xbf16, #tpu.memory_space<vmem>>, %arg11: memref<1x16xf32, #tpu.memory_space<vmem>>, %arg12: memref<128x16xbf16, #tpu.memory_space<vmem>>, %arg13: memref<1x16xf32, #tpu.memory_space<vmem>>, %arg14: memref<64x64xbf16, #tpu.memory_space<vmem>>, %arg15: memref<1x64xf32, #tpu.memory_space<vmem>>, %arg16: memref<64x16xbf16, #tpu.memory_space<vmem>>, %arg17: memref<1x16xf32, #tpu.memory_space<vmem>>, %arg18: memref<64x16xbf16, #tpu.memory_space<vmem>>, %arg19: memref<1x16xf32, #tpu.memory_space<vmem>>, %arg20: memref<16x128xbf16, #tpu.memory_space<vmem>>, %arg21: memref<1x128xf32, #tpu.memory_space<vmem>>, %arg22: memref<16x64xbf16, #tpu.memory_space<vmem>>, %arg23: memref<1x64xf32, #tpu.memory_space<vmem>>, %arg24: memref<64x64xbf16, #tpu.memory_space<vmem>>, %arg25: memref<1x64xf32, #tpu.memory_space<vmem>>, %arg26: memref<16x128xbf16, #tpu.memory_space<vmem>>, %arg27: memref<1x128xf32, #tpu.memory_space<vmem>>, %arg28: memref<8x128xf32, #tpu.memory_space<vmem>>, %arg29: memref<1x128xf32, #tpu.memory_space<vmem>>, %arg30: memref<8x128xf32, #tpu.memory_space<vmem>>, %arg31: memref<16x128xbf16, #tpu.memory_space<vmem>>, %arg32: memref<4xf32, #tpu.memory_space<smem>>) attributes {dimension_semantics = [#tpu.dimension_semantics<arbitrary>, #tpu.dimension_semantics<arbitrary>], iteration_bounds = array<i64: 2, 2>, scalar_prefetch = 0 : i64, scratch_operands = 3 : i64, tpu.core_type = #tpu.core_type<tc>, window_params = [{transform_indices = @transform_0, window_bounds = array<i64: 8, 128>}, {transform_indices = @transform_1, window_bounds = array<i64: 128, 128>}, {transform_indices = @transform_2, window_bounds = array<i64: 128, 128>}, {transform_indices = @transform_3, window_bounds = array<i64: 1, 128>}, {pipeline_mode = #tpu.pipeline_mode<synchronous>, transform_indices = @transform_4, window_bounds = array<i64: 8, 64>}, {pipeline_mode = #tpu.pipeline_mode<synchronous>, transform_indices = @transform_5, window_bounds = array<i64: 8, 1>}, {pipeline_mode = #tpu.pipeline_mode<synchronous>, transform_indices = @transform_6, window_bounds = array<i64: 8, 1>}, {pipeline_mode = #tpu.pipeline_mode<synchronous>, transform_indices = @transform_7, window_bounds = array<i64: 1, 128>}, {pipeline_mode = #tpu.pipeline_mode<synchronous>, transform_indices = @transform_8, window_bounds = array<i64: 128, 16>}, {pipeline_mode = #tpu.pipeline_mode<synchronous>, transform_indices = @transform_9, window_bounds = array<i64: 1, 16>}, {pipeline_mode = #tpu.pipeline_mode<synchronous>, transform_indices = @transform_10, window_bounds = array<i64: 128, 16>}, {pipeline_mode = #tpu.pipeline_mode<synchronous>, transform_indices = @transform_11, window_bounds = array<i64: 1, 16>}, {pipeline_mode = #tpu.pipeline_mode<synchronous>, transform_indices = @transform_12, window_bounds = array<i64: 64, 64>}, {pipeline_mode = #tpu.pipeline_mode<synchronous>, transform_indices = @transform_13, window_bounds = array<i64: 1, 64>}, {pipeline_mode = #tpu.pipeline_mode<synchronous>, transform_indices = @transform_14, window_bounds = array<i64: 64, 16>}, {pipeline_mode = #tpu.pipeline_mode<synchronous>, transform_indices = @transform_15, window_bounds = array<i64: 1, 16>}, {pipeline_mode = #tpu.pipeline_mode<synchronous>, transform_indices = @transform_16, window_bounds = array<i64: 64, 16>}, {pipeline_mode = #tpu.pipeline_mode<synchronous>, transform_indices = @transform_17, window_bounds = array<i64: 1, 16>}, {pipeline_mode = #tpu.pipeline_mode<synchronous>, transform_indices = @transform_18, window_bounds = array<i64: 16, 128>}, {pipeline_mode = #tpu.pipeline_mode<synchronous>, transform_indices = @transform_19, window_bounds = array<i64: 1, 128>}, {pipeline_mode = #tpu.pipeline_mode<synchronous>, transform_indices = @transform_20, window_bounds = array<i64: 16, 64>}, {pipeline_mode = #tpu.pipeline_mode<synchronous>, transform_indices = @transform_21, window_bounds = array<i64: 1, 64>}, {pipeline_mode = #tpu.pipeline_mode<synchronous>, transform_indices = @transform_22, window_bounds = array<i64: 64, 64>}, {pipeline_mode = #tpu.pipeline_mode<synchronous>, transform_indices = @transform_23, window_bounds = array<i64: 1, 64>}, {pipeline_mode = #tpu.pipeline_mode<synchronous>, transform_indices = @transform_24, window_bounds = array<i64: 16, 128>}, {pipeline_mode = #tpu.pipeline_mode<synchronous>, transform_indices = @transform_25, window_bounds = array<i64: 1, 128>}, {pipeline_mode = #tpu.pipeline_mode<synchronous>, transform_indices = @transform_26, window_bounds = array<i64: 8, 128>}, {pipeline_mode = #tpu.pipeline_mode<synchronous>, transform_indices = @transform_27, window_bounds = array<i64: 1, 128>}]} {
    %c0_i32 = arith.constant 0 : i32
    %0 = arith.cmpi eq, %arg0, %c0_i32 : i32
    %1 = arith.extui %0 : i1 to i32
    %c0_i32_0 = arith.constant 0 : i32
    %2 = arith.cmpi ne, %1, %c0_i32_0 : i32
    scf.if %2 {
      %c0_i32_5 = arith.constant 0 : i32
      %11 = arith.cmpi eq, %arg1, %c0_i32_5 : i32
      %12 = arith.extui %11 : i1 to i32
      %c0_i32_6 = arith.constant 0 : i32
      %13 = arith.cmpi ne, %12, %c0_i32_6 : i32
      scf.if %13 {
        %cst_14 = arith.constant 0.000000e+00 : f32
        %21 = vector.broadcast %cst_14 : f32 to vector<8x128xf32>
        %c0_15 = arith.constant 0 : index
        %c0_16 = arith.constant 0 : index
        %22 = vector.load %arg30[%c0_15, %c0_16] : memref<8x128xf32, #tpu.memory_space<vmem>>, vector<8x128xf32>
        tpu.vector_store %arg30[%c0_15, %c0_16], %21 {strides = array<i32>} : memref<8x128xf32, #tpu.memory_space<vmem>>, vector<8x128xf32>,
      } else {
      }
      %c0 = arith.constant 0 : index
      %c0_7 = arith.constant 0 : index
      %14 = vector.load %arg30[%c0, %c0_7] : memref<8x128xf32, #tpu.memory_space<vmem>>, vector<8x128xf32>
      %c0_8 = arith.constant 0 : index
      %c0_9 = arith.constant 0 : index
      %15 = vector.load %arg2[%c0_8, %c0_9] : memref<8x128xf32, #tpu.memory_space<vmem>>, vector<8x128xf32>
      %16 = arith.truncf %15 : vector<8x128xf32> to vector<8x128xbf16>
      %c0_10 = arith.constant 0 : index
      %c0_11 = arith.constant 0 : index
      %17 = vector.load %arg3[%c0_10, %c0_11] : memref<128x128xbf16, #tpu.memory_space<vmem>>, vector<128x128xbf16>
      %cst = arith.constant dense<0.000000e+00> : vector<8x128xf32>
      %18 = tpu.matmul %16, %17, %cst {dimension_numbers = #tpu.dot_dimension_numbers<[1], [0], [0], [1], [0, 0, 1, 1], [], []>} : vector<8x128xbf16>, vector<128x128xbf16>, vector<8x128xf32> -> vector<8x128xf32>
      %19 = arith.addf %14, %18 : vector<8x128xf32>
      %c0_12 = arith.constant 0 : index
      %c0_13 = arith.constant 0 : index
      %20 = vector.load %arg30[%c0_12, %c0_13] : memref<8x128xf32, #tpu.memory_space<vmem>>, vector<8x128xf32>
      tpu.vector_store %arg30[%c0_12, %c0_13], %19 {strides = array<i32>} : memref<8x128xf32, #tpu.memory_space<vmem>>, vector<8x128xf32>,
    } else {
    }
    %c1_i32 = arith.constant 1 : i32
    %3 = arith.cmpi eq, %arg0, %c1_i32 : i32
    %c0_i32_1 = arith.constant 0 : i32
    %4 = arith.cmpi eq, %arg1, %c0_i32_1 : i32
    %5 = arith.andi %3, %4 : i1
    %6 = arith.extui %5 : i1 to i32
    %c0_i32_2 = arith.constant 0 : i32
    %7 = arith.cmpi ne, %6, %c0_i32_2 : i32
    scf.if %7 {
      %c0 = arith.constant 0 : index
      %c0_5 = arith.constant 0 : index
      %11 = vector.load %arg6[%c0, %c0_5] : memref<8x64xf32, #tpu.memory_space<vmem>>, vector<8x64xf32>
      %c0_6 = arith.constant 0 : index
      %c0_7 = arith.constant 0 : index
      %12 = vector.load %arg30[%c0_6, %c0_7] : memref<8x128xf32, #tpu.memory_space<vmem>>, vector<8x128xf32>
      %c0_8 = arith.constant 0 : index
      %c0_9 = arith.constant 0 : index
      %13 = vector.load %arg9[%c0_8, %c0_9] : memref<1x128xf32, #tpu.memory_space<vmem>>, vector<1x128xf32>
      %14 = vector.broadcast %13 : vector<1x128xf32> to vector<8x128xf32>
      %15 = arith.addf %12, %14 : vector<8x128xf32>
      %cst = arith.constant 0.000000e+00 : f32
      %16 = vector.broadcast %cst : f32 to vector<8x128xf32>
      %17 = arith.maximumf %15, %16 : vector<8x128xf32>
      %c0_10 = arith.constant 0 : index
      %c0_11 = arith.constant 0 : index
      %18 = vector.load %arg10[%c0_10, %c0_11] : memref<128x16xbf16, #tpu.memory_space<vmem>>, vector<128x16xbf16>
      %19 = arith.truncf %17 : vector<8x128xf32> to vector<8x128xbf16>
      %cst_12 = arith.constant dense<0.000000e+00> : vector<8x16xf32>
      %20 = tpu.matmul %19, %18, %cst_12 {dimension_numbers = #tpu.dot_dimension_numbers<[1], [0], [0], [1], [0, 0, 1, 1], [], []>} : vector<8x128xbf16>, vector<128x16xbf16>, vector<8x16xf32> -> vector<8x16xf32>
      %c0_13 = arith.constant 0 : index
      %c0_14 = arith.constant 0 : index
      %21 = vector.load %arg11[%c0_13, %c0_14] : memref<1x16xf32, #tpu.memory_space<vmem>>, vector<1x16xf32>
      %22 = vector.broadcast %21 : vector<1x16xf32> to vector<8x16xf32>
      %23 = arith.addf %20, %22 : vector<8x16xf32>
      %c0_15 = arith.constant 0 : index
      %c0_16 = arith.constant 0 : index
      %24 = vector.load %arg12[%c0_15, %c0_16] : memref<128x16xbf16, #tpu.memory_space<vmem>>, vector<128x16xbf16>
      %25 = arith.truncf %17 : vector<8x128xf32> to vector<8x128xbf16>
      %cst_17 = arith.constant dense<0.000000e+00> : vector<8x16xf32>
      %26 = tpu.matmul %25, %24, %cst_17 {dimension_numbers = #tpu.dot_dimension_numbers<[1], [0], [0], [1], [0, 0, 1, 1], [], []>} : vector<8x128xbf16>, vector<128x16xbf16>, vector<8x16xf32> -> vector<8x16xf32>
      %c0_18 = arith.constant 0 : index
      %c0_19 = arith.constant 0 : index
      %27 = vector.load %arg13[%c0_18, %c0_19] : memref<1x16xf32, #tpu.memory_space<vmem>>, vector<1x16xf32>
      %28 = vector.broadcast %27 : vector<1x16xf32> to vector<8x16xf32>
      %29 = arith.addf %26, %28 : vector<8x16xf32>
      %c0_20 = arith.constant 0 : index
      %c0_21 = arith.constant 0 : index
      %30 = vector.load %arg14[%c0_20, %c0_21] : memref<64x64xbf16, #tpu.memory_space<vmem>>, vector<64x64xbf16>
      %31 = arith.truncf %11 : vector<8x64xf32> to vector<8x64xbf16>
      %cst_22 = arith.constant dense<0.000000e+00> : vector<8x64xf32>
      %32 = tpu.matmul %31, %30, %cst_22 {dimension_numbers = #tpu.dot_dimension_numbers<[1], [0], [0], [1], [0, 0, 1, 1], [], []>} : vector<8x64xbf16>, vector<64x64xbf16>, vector<8x64xf32> -> vector<8x64xf32>
      %c0_23 = arith.constant 0 : index
      %c0_24 = arith.constant 0 : index
      %33 = vector.load %arg15[%c0_23, %c0_24] : memref<1x64xf32, #tpu.memory_space<vmem>>, vector<1x64xf32>
      %34 = vector.broadcast %33 : vector<1x64xf32> to vector<8x64xf32>
      %35 = arith.addf %32, %34 : vector<8x64xf32>
      %cst_25 = arith.constant 0.000000e+00 : f32
      %36 = vector.broadcast %cst_25 : f32 to vector<8x64xf32>
      %37 = arith.maximumf %35, %36 : vector<8x64xf32>
      %c0_26 = arith.constant 0 : index
      %c0_27 = arith.constant 0 : index
      %38 = vector.load %arg16[%c0_26, %c0_27] : memref<64x16xbf16, #tpu.memory_space<vmem>>, vector<64x16xbf16>
      %39 = arith.truncf %37 : vector<8x64xf32> to vector<8x64xbf16>
      %cst_28 = arith.constant dense<0.000000e+00> : vector<8x16xf32>
      %40 = tpu.matmul %39, %38, %cst_28 {dimension_numbers = #tpu.dot_dimension_numbers<[1], [0], [0], [1], [0, 0, 1, 1], [], []>} : vector<8x64xbf16>, vector<64x16xbf16>, vector<8x16xf32> -> vector<8x16xf32>
      %c0_29 = arith.constant 0 : index
      %c0_30 = arith.constant 0 : index
      %41 = vector.load %arg17[%c0_29, %c0_30] : memref<1x16xf32, #tpu.memory_space<vmem>>, vector<1x16xf32>
      %42 = vector.broadcast %41 : vector<1x16xf32> to vector<8x16xf32>
      %43 = arith.addf %40, %42 : vector<8x16xf32>
      %c0_31 = arith.constant 0 : index
      %c0_32 = arith.constant 0 : index
      %44 = vector.load %arg18[%c0_31, %c0_32] : memref<64x16xbf16, #tpu.memory_space<vmem>>, vector<64x16xbf16>
      %45 = arith.truncf %37 : vector<8x64xf32> to vector<8x64xbf16>
      %cst_33 = arith.constant dense<0.000000e+00> : vector<8x16xf32>
      %46 = tpu.matmul %45, %44, %cst_33 {dimension_numbers = #tpu.dot_dimension_numbers<[1], [0], [0], [1], [0, 0, 1, 1], [], []>} : vector<8x64xbf16>, vector<64x16xbf16>, vector<8x16xf32> -> vector<8x16xf32>
      %c0_34 = arith.constant 0 : index
      %c0_35 = arith.constant 0 : index
      %47 = vector.load %arg19[%c0_34, %c0_35] : memref<1x16xf32, #tpu.memory_space<vmem>>, vector<1x16xf32>
      %48 = vector.broadcast %47 : vector<1x16xf32> to vector<8x16xf32>
      %49 = arith.addf %46, %48 : vector<8x16xf32>
      %50 = math.exp %29 : vector<8x16xf32>
      %c0_36 = arith.constant 0 : index
      %c0_37 = arith.constant 0 : index
      %51 = vector.load %arg7[%c0_36, %c0_37] : memref<8x1xf32, #tpu.memory_space<vmem>>, vector<8x1xf32>
      %52 = vector.broadcast %51 : vector<8x1xf32> to vector<8x16xf32>
      %53 = arith.mulf %50, %52 : vector<8x16xf32>
      %54 = arith.addf %23, %53 : vector<8x16xf32>
      %55 = math.exp %49 : vector<8x16xf32>
      %c0_38 = arith.constant 0 : index
      %c0_39 = arith.constant 0 : index
      %56 = vector.load %arg8[%c0_38, %c0_39] : memref<8x1xf32, #tpu.memory_space<vmem>>, vector<8x1xf32>
      %57 = vector.broadcast %56 : vector<8x1xf32> to vector<8x16xf32>
      %58 = arith.mulf %55, %57 : vector<8x16xf32>
      %59 = arith.addf %43, %58 : vector<8x16xf32>
      %60 = tpu.concatenate %54, %59 in 0 : vector<8x16xf32>, vector<8x16xf32> -> vector<16x16xf32>
      %c0_40 = arith.constant 0 : index
      %c0_41 = arith.constant 0 : index
      %61 = vector.load %arg20[%c0_40, %c0_41] : memref<16x128xbf16, #tpu.memory_space<vmem>>, vector<16x128xbf16>
      %62 = arith.truncf %60 : vector<16x16xf32> to vector<16x16xbf16>
      %cst_42 = arith.constant dense<0.000000e+00> : vector<16x128xf32>
      %63 = tpu.matmul %62, %61, %cst_42 {dimension_numbers = #tpu.dot_dimension_numbers<[1], [0], [0], [1], [0, 0, 1, 1], [], []>} : vector<16x16xbf16>, vector<16x128xbf16>, vector<16x128xf32> -> vector<16x128xf32>
      %c0_43 = arith.constant 0 : index
      %c0_44 = arith.constant 0 : index
      %64 = vector.load %arg21[%c0_43, %c0_44] : memref<1x128xf32, #tpu.memory_space<vmem>>, vector<1x128xf32>
      %65 = vector.broadcast %64 : vector<1x128xf32> to vector<16x128xf32>
      %66 = arith.addf %63, %65 : vector<16x128xf32>
      %cst_45 = arith.constant 0.000000e+00 : f32
      %67 = vector.broadcast %cst_45 : f32 to vector<16x128xf32>
      %68 = arith.maximumf %66, %67 : vector<16x128xf32>
      %69 = arith.truncf %68 : vector<16x128xf32> to vector<16x128xbf16>
      %c0_46 = arith.constant 0 : index
      %c0_47 = arith.constant 0 : index
      %70 = vector.load %arg31[%c0_46, %c0_47] : memref<16x128xbf16, #tpu.memory_space<vmem>>, vector<16x128xbf16>
      tpu.vector_store %arg31[%c0_46, %c0_47], %69 {strides = array<i32>} : memref<16x128xbf16, #tpu.memory_space<vmem>>, vector<16x128xbf16>,
      %c0_48 = arith.constant 0 : index
      %c0_49 = arith.constant 0 : index
      %71 = vector.load %arg22[%c0_48, %c0_49] : memref<16x64xbf16, #tpu.memory_space<vmem>>, vector<16x64xbf16>
      %72 = arith.truncf %60 : vector<16x16xf32> to vector<16x16xbf16>
      %cst_50 = arith.constant dense<0.000000e+00> : vector<16x64xf32>
      %73 = tpu.matmul %72, %71, %cst_50 {dimension_numbers = #tpu.dot_dimension_numbers<[1], [0], [0], [1], [0, 0, 1, 1], [], []>} : vector<16x16xbf16>, vector<16x64xbf16>, vector<16x64xf32> -> vector<16x64xf32>
      %c0_51 = arith.constant 0 : index
      %c0_52 = arith.constant 0 : index
      %74 = vector.load %arg23[%c0_51, %c0_52] : memref<1x64xf32, #tpu.memory_space<vmem>>, vector<1x64xf32>
      %75 = vector.broadcast %74 : vector<1x64xf32> to vector<16x64xf32>
      %76 = arith.addf %73, %75 : vector<16x64xf32>
      %cst_53 = arith.constant 0.000000e+00 : f32
      %77 = vector.broadcast %cst_53 : f32 to vector<16x64xf32>
      %78 = arith.maximumf %76, %77 : vector<16x64xf32>
      %c0_54 = arith.constant 0 : index
      %c0_55 = arith.constant 0 : index
      %79 = vector.load %arg24[%c0_54, %c0_55] : memref<64x64xbf16, #tpu.memory_space<vmem>>, vector<64x64xbf16>
      %80 = arith.truncf %78 : vector<16x64xf32> to vector<16x64xbf16>
      %cst_56 = arith.constant dense<0.000000e+00> : vector<16x64xf32>
      %81 = tpu.matmul %80, %79, %cst_56 {dimension_numbers = #tpu.dot_dimension_numbers<[1], [0], [0], [1], [0, 0, 1, 1], [], []>} : vector<16x64xbf16>, vector<64x64xbf16>, vector<16x64xf32> -> vector<16x64xf32>
      %c0_57 = arith.constant 0 : index
      %c0_58 = arith.constant 0 : index
      %82 = vector.load %arg25[%c0_57, %c0_58] : memref<1x64xf32, #tpu.memory_space<vmem>>, vector<1x64xf32>
      %83 = vector.broadcast %82 : vector<1x64xf32> to vector<16x64xf32>
      %84 = arith.addf %81, %83 : vector<16x64xf32>
      %85 = vector.extract_strided_slice %84 {offsets = [8, 0], sizes = [8, 64], strides = [1, 1]} : vector<16x64xf32> to vector<8x64xf32>
      %86 = arith.subf %85, %11 : vector<8x64xf32>
      %87 = arith.mulf %86, %86 : vector<8x64xf32>
      %88 = vector.shape_cast %87 : vector<8x64xf32> to vector<1x8x64xf32>
      %cst_59 = arith.constant dense<0.000000e+00> : vector<1xf32>
      %89 = vector.multi_reduction <add>, %88, %cst_59 [1, 2] : vector<1x8x64xf32> to vector<1xf32>
      %90 = vector.shape_cast %89 : vector<1xf32> to vector<1x1x1xf32>
      %91 = vector.extract %90[0, 0, 0] : f32 from vector<1x1x1xf32>
      %92 = vector.extract_strided_slice %84 {offsets = [0, 0], sizes = [8, 64], strides = [1, 1]} : vector<16x64xf32> to vector<8x64xf32>
      %93 = arith.subf %92, %11 : vector<8x64xf32>
      %94 = arith.mulf %93, %93 : vector<8x64xf32>
      %95 = vector.shape_cast %94 : vector<8x64xf32> to vector<1x8x64xf32>
      %cst_60 = arith.constant dense<0.000000e+00> : vector<1xf32>
      %96 = vector.multi_reduction <add>, %95, %cst_60 [1, 2] : vector<1x8x64xf32> to vector<1xf32>
      %97 = vector.shape_cast %96 : vector<1xf32> to vector<1x1x1xf32>
      %98 = vector.extract %97[0, 0, 0] : f32 from vector<1x1x1xf32>
      %cst_61 = arith.constant 1.000000e+00 : f32
      %99 = vector.broadcast %cst_61 : f32 to vector<8x16xf32>
      %100 = arith.addf %99, %49 : vector<8x16xf32>
      %101 = arith.mulf %43, %43 : vector<8x16xf32>
      %102 = arith.subf %100, %101 : vector<8x16xf32>
      %103 = math.exp %49 : vector<8x16xf32>
      %104 = arith.subf %102, %103 : vector<8x16xf32>
      %105 = vector.shape_cast %104 : vector<8x16xf32> to vector<1x8x16xf32>
      %cst_62 = arith.constant dense<0.000000e+00> : vector<1xf32>
      %106 = vector.multi_reduction <add>, %105, %cst_62 [1, 2] : vector<1x8x16xf32> to vector<1xf32>
      %107 = vector.shape_cast %106 : vector<1xf32> to vector<1x1x1xf32>
      %108 = vector.extract %107[0, 0, 0] : f32 from vector<1x1x1xf32>
      %cst_63 = arith.constant 5.000000e-01 : f32
      %109 = arith.mulf %cst_63, %108 : f32
      %cst_64 = arith.constant 1.000000e+00 : f32
      %110 = vector.broadcast %cst_64 : f32 to vector<8x16xf32>
      %111 = arith.addf %110, %29 : vector<8x16xf32>
      %112 = arith.mulf %23, %23 : vector<8x16xf32>
      %113 = arith.subf %111, %112 : vector<8x16xf32>
      %114 = math.exp %29 : vector<8x16xf32>
      %115 = arith.subf %113, %114 : vector<8x16xf32>
      %116 = vector.shape_cast %115 : vector<8x16xf32> to vector<1x8x16xf32>
      %cst_65 = arith.constant dense<0.000000e+00> : vector<1xf32>
      %117 = vector.multi_reduction <add>, %116, %cst_65 [1, 2] : vector<1x8x16xf32> to vector<1xf32>
      %118 = vector.shape_cast %117 : vector<1xf32> to vector<1x1x1xf32>
      %119 = vector.extract %118[0, 0, 0] : f32 from vector<1x1x1xf32>
      %cst_66 = arith.constant 5.000000e-01 : f32
      %120 = arith.mulf %cst_66, %119 : f32
      %121 = arith.addf %109, %120 : f32
      %122 = arith.subf %23, %43 : vector<8x16xf32>
      %123 = arith.mulf %122, %122 : vector<8x16xf32>
      %cst_67 = arith.constant dense<0.000000e+00> : vector<8xf32>
      %124 = vector.multi_reduction <add>, %123, %cst_67 [1] : vector<8x16xf32> to vector<8xf32>
      %125 = vector.shape_cast %124 : vector<8xf32> to vector<8x1xf32>
      %cst_68 = arith.constant 5.000000e-01 : f32
      %126 = vector.broadcast %cst_68 : f32 to vector<8x16xf32>
      %127 = arith.mulf %126, %29 : vector<8x16xf32>
      %128 = math.exp %127 : vector<8x16xf32>
      %cst_69 = arith.constant 5.000000e-01 : f32
      %129 = vector.broadcast %cst_69 : f32 to vector<8x16xf32>
      %130 = arith.mulf %129, %49 : vector<8x16xf32>
      %131 = math.exp %130 : vector<8x16xf32>
      %132 = arith.subf %128, %131 : vector<8x16xf32>
      %133 = arith.mulf %132, %132 : vector<8x16xf32>
      %cst_70 = arith.constant dense<0.000000e+00> : vector<8xf32>
      %134 = vector.multi_reduction <add>, %133, %cst_70 [1] : vector<8x16xf32> to vector<8xf32>
      %135 = vector.shape_cast %134 : vector<8xf32> to vector<8x1xf32>
      %136 = arith.addf %125, %135 : vector<8x1xf32>
      %137 = math.sqrt %136 : vector<8x1xf32>
      %138 = vector.shape_cast %137 : vector<8x1xf32> to vector<1x8x1xf32>
      %cst_71 = arith.constant dense<0.000000e+00> : vector<1xf32>
      %139 = vector.multi_reduction <add>, %138, %cst_71 [1, 2] : vector<1x8x1xf32> to vector<1xf32>
      %140 = vector.shape_cast %139 : vector<1xf32> to vector<1x1x1xf32>
      %141 = vector.extract %140[0, 0, 0] : f32 from vector<1x1x1xf32>
      %c0_72 = arith.constant 0 : index
      %142 = memref.load %arg32[%c0_72] : memref<4xf32, #tpu.memory_space<smem>>
      memref.store %91, %arg32[%c0_72] : memref<4xf32, #tpu.memory_space<smem>>
      %c1 = arith.constant 1 : index
      %143 = memref.load %arg32[%c1] : memref<4xf32, #tpu.memory_space<smem>>
      memref.store %98, %arg32[%c1] : memref<4xf32, #tpu.memory_space<smem>>
      %c2 = arith.constant 2 : index
      %144 = memref.load %arg32[%c2] : memref<4xf32, #tpu.memory_space<smem>>
      memref.store %121, %arg32[%c2] : memref<4xf32, #tpu.memory_space<smem>>
      %c3 = arith.constant 3 : index
      %145 = memref.load %arg32[%c3] : memref<4xf32, #tpu.memory_space<smem>>
      memref.store %141, %arg32[%c3] : memref<4xf32, #tpu.memory_space<smem>>
      %c0_73 = arith.constant 0 : index
      %c0_74 = arith.constant 0 : index
      %146 = vector.load %arg26[%c0_73, %c0_74] : memref<16x128xbf16, #tpu.memory_space<vmem>>, vector<16x128xbf16>
      %147 = arith.truncf %54 : vector<8x16xf32> to vector<8x16xbf16>
      %cst_75 = arith.constant dense<0.000000e+00> : vector<8x128xf32>
      %148 = tpu.matmul %147, %146, %cst_75 {dimension_numbers = #tpu.dot_dimension_numbers<[1], [0], [0], [1], [0, 0, 1, 1], [], []>} : vector<8x16xbf16>, vector<16x128xbf16>, vector<8x128xf32> -> vector<8x128xf32>
      %c0_76 = arith.constant 0 : index
      %c0_77 = arith.constant 0 : index
      %149 = vector.load %arg27[%c0_76, %c0_77] : memref<1x128xf32, #tpu.memory_space<vmem>>, vector<1x128xf32>
      %150 = vector.broadcast %149 : vector<1x128xf32> to vector<8x128xf32>
      %151 = arith.addf %148, %150 : vector<8x128xf32>
      %cst_78 = arith.constant dense<0xFF800000> : vector<8xf32>
      %152 = vector.multi_reduction <maximumf>, %151, %cst_78 [1] : vector<8x128xf32> to vector<8xf32>
      %153 = vector.shape_cast %152 : vector<8xf32> to vector<8x1xf32>
      %154 = vector.broadcast %153 : vector<8x1xf32> to vector<8x128xf32>
      %155 = arith.subf %151, %154 : vector<8x128xf32>
      %156 = math.exp %155 : vector<8x128xf32>
      %cst_79 = arith.constant dense<0.000000e+00> : vector<8xf32>
      %157 = vector.multi_reduction <add>, %156, %cst_79 [1] : vector<8x128xf32> to vector<8xf32>
      %158 = vector.shape_cast %157 : vector<8xf32> to vector<8x1xf32>
      %159 = math.log %158 : vector<8x1xf32>
      %160 = vector.broadcast %159 : vector<8x1xf32> to vector<8x128xf32>
      %161 = arith.subf %155, %160 : vector<8x128xf32>
      %c0_80 = arith.constant 0 : index
      %c0_81 = arith.constant 0 : index
      %162 = vector.load %arg28[%c0_80, %c0_81] : memref<8x128xf32, #tpu.memory_space<vmem>>, vector<8x128xf32>
      tpu.vector_store %arg28[%c0_80, %c0_81], %161 {strides = array<i32>} : memref<8x128xf32, #tpu.memory_space<vmem>>, vector<8x128xf32>,
    } else {
    }
    %c1_i32_3 = arith.constant 1 : i32
    %8 = arith.cmpi eq, %arg0, %c1_i32_3 : i32
    %9 = arith.extui %8 : i1 to i32
    %c0_i32_4 = arith.constant 0 : i32
    %10 = arith.cmpi ne, %9, %c0_i32_4 : i32
    scf.if %10 {
      %c0 = arith.constant 0 : index
      %c0_5 = arith.constant 0 : index
      %11 = vector.load %arg31[%c0, %c0_5] : memref<16x128xbf16, #tpu.memory_space<vmem>>, vector<16x128xbf16>
      %c0_6 = arith.constant 0 : index
      %c0_7 = arith.constant 0 : index
      %12 = vector.load %arg4[%c0_6, %c0_7] : memref<128x128xbf16, #tpu.memory_space<vmem>>, vector<128x128xbf16>
      %cst = arith.constant dense<0.000000e+00> : vector<16x128xf32>
      %13 = tpu.matmul %11, %12, %cst {dimension_numbers = #tpu.dot_dimension_numbers<[1], [0], [0], [1], [0, 0, 1, 1], [], []>} : vector<16x128xbf16>, vector<128x128xbf16>, vector<16x128xf32> -> vector<16x128xf32>
      %c0_8 = arith.constant 0 : index
      %c0_9 = arith.constant 0 : index
      %14 = vector.load %arg5[%c0_8, %c0_9] : memref<1x128xf32, #tpu.memory_space<vmem>>, vector<1x128xf32>
      %15 = vector.broadcast %14 : vector<1x128xf32> to vector<16x128xf32>
      %16 = arith.addf %13, %15 : vector<16x128xf32>
      %c0_10 = arith.constant 0 : index
      %c0_11 = arith.constant 0 : index
      %17 = vector.load %arg2[%c0_10, %c0_11] : memref<8x128xf32, #tpu.memory_space<vmem>>, vector<8x128xf32>
      %c0_12 = arith.constant 0 : index
      %18 = memref.load %arg32[%c0_12] : memref<4xf32, #tpu.memory_space<smem>>
      %19 = vector.extract_strided_slice %16 {offsets = [0, 0], sizes = [8, 128], strides = [1, 1]} : vector<16x128xf32> to vector<8x128xf32>
      %20 = arith.subf %19, %17 : vector<8x128xf32>
      %21 = arith.mulf %20, %20 : vector<8x128xf32>
      %22 = vector.shape_cast %21 : vector<8x128xf32> to vector<1x8x128xf32>
      %cst_13 = arith.constant dense<0.000000e+00> : vector<1xf32>
      %23 = vector.multi_reduction <add>, %22, %cst_13 [1, 2] : vector<1x8x128xf32> to vector<1xf32>
      %24 = vector.shape_cast %23 : vector<1xf32> to vector<1x1x1xf32>
      %25 = vector.extract %24[0, 0, 0] : f32 from vector<1x1x1xf32>
      %26 = arith.addf %18, %25 : f32
      %c0_14 = arith.constant 0 : index
      %27 = memref.load %arg32[%c0_14] : memref<4xf32, #tpu.memory_space<smem>>
      memref.store %26, %arg32[%c0_14] : memref<4xf32, #tpu.memory_space<smem>>
      %c1 = arith.constant 1 : index
      %28 = memref.load %arg32[%c1] : memref<4xf32, #tpu.memory_space<smem>>
      %29 = vector.extract_strided_slice %16 {offsets = [8, 0], sizes = [8, 128], strides = [1, 1]} : vector<16x128xf32> to vector<8x128xf32>
      %30 = arith.subf %29, %17 : vector<8x128xf32>
      %31 = arith.mulf %30, %30 : vector<8x128xf32>
      %32 = vector.shape_cast %31 : vector<8x128xf32> to vector<1x8x128xf32>
      %cst_15 = arith.constant dense<0.000000e+00> : vector<1xf32>
      %33 = vector.multi_reduction <add>, %32, %cst_15 [1, 2] : vector<1x8x128xf32> to vector<1xf32>
      %34 = vector.shape_cast %33 : vector<1xf32> to vector<1x1x1xf32>
      %35 = vector.extract %34[0, 0, 0] : f32 from vector<1x1x1xf32>
      %36 = arith.addf %28, %35 : f32
      %c1_16 = arith.constant 1 : index
      %37 = memref.load %arg32[%c1_16] : memref<4xf32, #tpu.memory_space<smem>>
      memref.store %36, %arg32[%c1_16] : memref<4xf32, #tpu.memory_space<smem>>
      %c1_i32_17 = arith.constant 1 : i32
      %38 = arith.cmpi eq, %arg1, %c1_i32_17 : i32
      %39 = arith.extui %38 : i1 to i32
      %c0_i32_18 = arith.constant 0 : i32
      %40 = arith.cmpi ne, %39, %c0_i32_18 : i32
      scf.if %40 {
        %41 = tpu.iota {dimensions = array<i32: 1>} : vector<1x128xi32>
        %c0_i32_19 = arith.constant 0 : i32
        %42 = vector.broadcast %c0_i32_19 : i32 to vector<1x128xi32>
        %43 = arith.cmpi eq, %41, %42 : vector<1x128xi32>
        %c0_20 = arith.constant 0 : index
        %44 = memref.load %arg32[%c0_20] : memref<4xf32, #tpu.memory_space<smem>>
        %cst_21 = arith.constant 0.000000e+00 : f32
        %45 = vector.broadcast %44 : f32 to vector<1x128xf32>
        %46 = vector.broadcast %cst_21 : f32 to vector<1x128xf32>
        %47 = arith.select %43, %45, %46 : vector<1x128xi1>, vector<1x128xf32>
        %c1_i32_22 = arith.constant 1 : i32
        %48 = vector.broadcast %c1_i32_22 : i32 to vector<1x128xi32>
        %49 = arith.cmpi eq, %41, %48 : vector<1x128xi32>
        %c1_23 = arith.constant 1 : index
        %50 = memref.load %arg32[%c1_23] : memref<4xf32, #tpu.memory_space<smem>>
        %cst_24 = arith.constant 0.000000e+00 : f32
        %51 = vector.broadcast %50 : f32 to vector<1x128xf32>
        %52 = vector.broadcast %cst_24 : f32 to vector<1x128xf32>
        %53 = arith.select %49, %51, %52 : vector<1x128xi1>, vector<1x128xf32>
        %54 = arith.addf %47, %53 : vector<1x128xf32>
        %c2_i32 = arith.constant 2 : i32
        %55 = vector.broadcast %c2_i32 : i32 to vector<1x128xi32>
        %56 = arith.cmpi eq, %41, %55 : vector<1x128xi32>
        %c2 = arith.constant 2 : index
        %57 = memref.load %arg32[%c2] : memref<4xf32, #tpu.memory_space<smem>>
        %cst_25 = arith.constant 0.000000e+00 : f32
        %58 = vector.broadcast %57 : f32 to vector<1x128xf32>
        %59 = vector.broadcast %cst_25 : f32 to vector<1x128xf32>
        %60 = arith.select %56, %58, %59 : vector<1x128xi1>, vector<1x128xf32>
        %61 = arith.addf %54, %60 : vector<1x128xf32>
        %c3_i32 = arith.constant 3 : i32
        %62 = vector.broadcast %c3_i32 : i32 to vector<1x128xi32>
        %63 = arith.cmpi eq, %41, %62 : vector<1x128xi32>
        %c3 = arith.constant 3 : index
        %64 = memref.load %arg32[%c3] : memref<4xf32, #tpu.memory_space<smem>>
        %cst_26 = arith.constant 0.000000e+00 : f32
        %65 = vector.broadcast %64 : f32 to vector<1x128xf32>
        %66 = vector.broadcast %cst_26 : f32 to vector<1x128xf32>
        %67 = arith.select %63, %65, %66 : vector<1x128xi1>, vector<1x128xf32>
        %68 = arith.addf %61, %67 : vector<1x128xf32>
        %c0_27 = arith.constant 0 : index
        %c0_28 = arith.constant 0 : index
        %69 = vector.load %arg29[%c0_27, %c0_28] : memref<1x128xf32, #tpu.memory_space<vmem>>, vector<1x128xf32>
        tpu.vector_store %arg29[%c0_27, %c0_28], %68 {strides = array<i32>} : memref<1x128xf32, #tpu.memory_space<vmem>>, vector<1x128xf32>,
      } else {
      }
    } else {
    }
    return
  }
  func.func @transform_0(%arg0: i32, %arg1: i32) -> (i32, i32) {
    %c0_i32 = arith.constant 0 : i32
    %c0_i32_0 = arith.constant 0 : i32
    return %c0_i32, %arg1 : i32, i32
  }
  func.func @transform_1(%arg0: i32, %arg1: i32) -> (i32, i32) {
    %c1_i32 = arith.constant 1 : i32
    %0 = arith.subi %c1_i32, %arg0 : i32
    %1 = arith.muli %0, %arg1 : i32
    %c1_i32_0 = arith.constant 1 : i32
    %2 = arith.muli %arg0, %c1_i32_0 : i32
    %3 = arith.addi %1, %2 : i32
    %c0_i32 = arith.constant 0 : i32
    %c0_i32_1 = arith.constant 0 : i32
    return %3, %c0_i32 : i32, i32
  }
  func.func @transform_2(%arg0: i32, %arg1: i32) -> (i32, i32) {
    %0 = arith.muli %arg0, %arg1 : i32
    %c0_i32 = arith.constant 0 : i32
    %c0_i32_0 = arith.constant 0 : i32
    return %c0_i32, %0 : i32, i32
  }
  func.func @transform_3(%arg0: i32, %arg1: i32) -> (i32, i32) {
    %0 = arith.muli %arg0, %arg1 : i32
    %c0_i32 = arith.constant 0 : i32
    %c0_i32_0 = arith.constant 0 : i32
    return %c0_i32, %0 : i32, i32
  }
  func.func @transform_4(%arg0: i32, %arg1: i32) -> (i32, i32) {
    %c0_i32 = arith.constant 0 : i32
    %c0_i32_0 = arith.constant 0 : i32
    %c0_i32_1 = arith.constant 0 : i32
    return %c0_i32, %c0_i32_0 : i32, i32
  }
  func.func @transform_5(%arg0: i32, %arg1: i32) -> (i32, i32) {
    %c0_i32 = arith.constant 0 : i32
    %c0_i32_0 = arith.constant 0 : i32
    %c0_i32_1 = arith.constant 0 : i32
    return %c0_i32, %c0_i32_0 : i32, i32
  }
  func.func @transform_6(%arg0: i32, %arg1: i32) -> (i32, i32) {
    %c0_i32 = arith.constant 0 : i32
    %c0_i32_0 = arith.constant 0 : i32
    %c0_i32_1 = arith.constant 0 : i32
    return %c0_i32, %c0_i32_0 : i32, i32
  }
  func.func @transform_7(%arg0: i32, %arg1: i32) -> (i32, i32) {
    %c0_i32 = arith.constant 0 : i32
    %c0_i32_0 = arith.constant 0 : i32
    %c0_i32_1 = arith.constant 0 : i32
    return %c0_i32, %c0_i32_0 : i32, i32
  }
  func.func @transform_8(%arg0: i32, %arg1: i32) -> (i32, i32) {
    %c0_i32 = arith.constant 0 : i32
    %c0_i32_0 = arith.constant 0 : i32
    %c0_i32_1 = arith.constant 0 : i32
    return %c0_i32, %c0_i32_0 : i32, i32
  }
  func.func @transform_9(%arg0: i32, %arg1: i32) -> (i32, i32) {
    %c0_i32 = arith.constant 0 : i32
    %c0_i32_0 = arith.constant 0 : i32
    %c0_i32_1 = arith.constant 0 : i32
    return %c0_i32, %c0_i32_0 : i32, i32
  }
  func.func @transform_10(%arg0: i32, %arg1: i32) -> (i32, i32) {
    %c0_i32 = arith.constant 0 : i32
    %c0_i32_0 = arith.constant 0 : i32
    %c0_i32_1 = arith.constant 0 : i32
    return %c0_i32, %c0_i32_0 : i32, i32
  }
  func.func @transform_11(%arg0: i32, %arg1: i32) -> (i32, i32) {
    %c0_i32 = arith.constant 0 : i32
    %c0_i32_0 = arith.constant 0 : i32
    %c0_i32_1 = arith.constant 0 : i32
    return %c0_i32, %c0_i32_0 : i32, i32
  }
  func.func @transform_12(%arg0: i32, %arg1: i32) -> (i32, i32) {
    %c0_i32 = arith.constant 0 : i32
    %c0_i32_0 = arith.constant 0 : i32
    %c0_i32_1 = arith.constant 0 : i32
    return %c0_i32, %c0_i32_0 : i32, i32
  }
  func.func @transform_13(%arg0: i32, %arg1: i32) -> (i32, i32) {
    %c0_i32 = arith.constant 0 : i32
    %c0_i32_0 = arith.constant 0 : i32
    %c0_i32_1 = arith.constant 0 : i32
    return %c0_i32, %c0_i32_0 : i32, i32
  }
  func.func @transform_14(%arg0: i32, %arg1: i32) -> (i32, i32) {
    %c0_i32 = arith.constant 0 : i32
    %c0_i32_0 = arith.constant 0 : i32
    %c0_i32_1 = arith.constant 0 : i32
    return %c0_i32, %c0_i32_0 : i32, i32
  }
  func.func @transform_15(%arg0: i32, %arg1: i32) -> (i32, i32) {
    %c0_i32 = arith.constant 0 : i32
    %c0_i32_0 = arith.constant 0 : i32
    %c0_i32_1 = arith.constant 0 : i32
    return %c0_i32, %c0_i32_0 : i32, i32
  }
  func.func @transform_16(%arg0: i32, %arg1: i32) -> (i32, i32) {
    %c0_i32 = arith.constant 0 : i32
    %c0_i32_0 = arith.constant 0 : i32
    %c0_i32_1 = arith.constant 0 : i32
    return %c0_i32, %c0_i32_0 : i32, i32
  }
  func.func @transform_17(%arg0: i32, %arg1: i32) -> (i32, i32) {
    %c0_i32 = arith.constant 0 : i32
    %c0_i32_0 = arith.constant 0 : i32
    %c0_i32_1 = arith.constant 0 : i32
    return %c0_i32, %c0_i32_0 : i32, i32
  }
  func.func @transform_18(%arg0: i32, %arg1: i32) -> (i32, i32) {
    %c0_i32 = arith.constant 0 : i32
    %c0_i32_0 = arith.constant 0 : i32
    %c0_i32_1 = arith.constant 0 : i32
    return %c0_i32, %c0_i32_0 : i32, i32
  }
  func.func @transform_19(%arg0: i32, %arg1: i32) -> (i32, i32) {
    %c0_i32 = arith.constant 0 : i32
    %c0_i32_0 = arith.constant 0 : i32
    %c0_i32_1 = arith.constant 0 : i32
    return %c0_i32, %c0_i32_0 : i32, i32
  }
  func.func @transform_20(%arg0: i32, %arg1: i32) -> (i32, i32) {
    %c0_i32 = arith.constant 0 : i32
    %c0_i32_0 = arith.constant 0 : i32
    %c0_i32_1 = arith.constant 0 : i32
    return %c0_i32, %c0_i32_0 : i32, i32
  }
  func.func @transform_21(%arg0: i32, %arg1: i32) -> (i32, i32) {
    %c0_i32 = arith.constant 0 : i32
    %c0_i32_0 = arith.constant 0 : i32
    %c0_i32_1 = arith.constant 0 : i32
    return %c0_i32, %c0_i32_0 : i32, i32
  }
  func.func @transform_22(%arg0: i32, %arg1: i32) -> (i32, i32) {
    %c0_i32 = arith.constant 0 : i32
    %c0_i32_0 = arith.constant 0 : i32
    %c0_i32_1 = arith.constant 0 : i32
    return %c0_i32, %c0_i32_0 : i32, i32
  }
  func.func @transform_23(%arg0: i32, %arg1: i32) -> (i32, i32) {
    %c0_i32 = arith.constant 0 : i32
    %c0_i32_0 = arith.constant 0 : i32
    %c0_i32_1 = arith.constant 0 : i32
    return %c0_i32, %c0_i32_0 : i32, i32
  }
  func.func @transform_24(%arg0: i32, %arg1: i32) -> (i32, i32) {
    %c0_i32 = arith.constant 0 : i32
    %c0_i32_0 = arith.constant 0 : i32
    %c0_i32_1 = arith.constant 0 : i32
    return %c0_i32, %c0_i32_0 : i32, i32
  }
  func.func @transform_25(%arg0: i32, %arg1: i32) -> (i32, i32) {
    %c0_i32 = arith.constant 0 : i32
    %c0_i32_0 = arith.constant 0 : i32
    %c0_i32_1 = arith.constant 0 : i32
    return %c0_i32, %c0_i32_0 : i32, i32
  }
  func.func @transform_26(%arg0: i32, %arg1: i32) -> (i32, i32) {
    %c0_i32 = arith.constant 0 : i32
    %c0_i32_0 = arith.constant 0 : i32
    %c0_i32_1 = arith.constant 0 : i32
    return %c0_i32, %c0_i32_0 : i32, i32
  }
  func.func @transform_27(%arg0: i32, %arg1: i32) -> (i32, i32) {
    %c0_i32 = arith.constant 0 : i32
    %c0_i32_0 = arith.constant 0 : i32
    %c0_i32_1 = arith.constant 0 : i32
    return %c0_i32, %c0_i32_0 : i32, i32
  }
}

</mosaic_0001>

<llo_original>
// kernel: tpu_custom_call.1
$region0: #{tpu_custom_call.1}
  #allocation0 [shape = 'u32[]', space=smem, size = 0x4, offset = 0x4, fixed_abs, tag = 'smem constant byte address 0x4 - core index']
  #allocation1 [shape = 'u32[72,128]{1,0:T(1,128)}', space=vmem, size = 0x9000, scoped, tag = 'internal scratch']
  #allocation2 [shape = 'f32[8,128]{1,0:T(8,128)}', space=vmem, size = 0x1000, scoped, tag = 'scratch operand']
  #allocation3 [shape = 'bf16[16,128]{1,0:T(8,128)(2,1)}', space=vmem, size = 0x1000, scoped, tag = 'scratch operand']
  #allocation4 [shape = 'f32[4]{0:T(128)}', space=smem, size = 0x200, scoped, tag = 'scratch operand']
  %s0 = inlined_call_operand.vmem [shape: f32[8,256], index: 0, kind: input, shape index: {}]
  %s1 = inlined_call_operand.vmem [shape: bf16[256,128], index: 1, kind: input, shape index: {}]
  %s2 = inlined_call_operand.hbm [shape: bf16[128,256], index: 2, kind: input, shape index: {}]
  %s3 = inlined_call_operand.hbm [shape: f32[1,256], index: 3, kind: input, shape index: {}]
  %s4 = inlined_call_operand.vmem [shape: f32[8,64], index: 4, kind: input, shape index: {}]
  %s5 = inlined_call_operand.vmem [shape: f32[8,1], index: 5, kind: input, shape index: {}]
  %s6 = inlined_call_operand.vmem [shape: f32[8,1], index: 6, kind: input, shape index: {}]
  %s7 = inlined_call_operand.hbm [shape: f32[1,128], index: 7, kind: input, shape index: {}]
  %s8 = inlined_call_operand.vmem [shape: bf16[128,16], index: 8, kind: input, shape index: {}]
  %s9 = inlined_call_operand.hbm [shape: f32[1,16], index: 9, kind: input, shape index: {}]
  %s10 = inlined_call_operand.vmem [shape: bf16[128,16], index: 10, kind: input, shape index: {}]
  %s11 = inlined_call_operand.hbm [shape: f32[1,16], index: 11, kind: input, shape index: {}]
  %s12 = inlined_call_operand.vmem [shape: bf16[64,64], index: 12, kind: input, shape index: {}]
  %s13 = inlined_call_operand.hbm [shape: f32[1,64], index: 13, kind: input, shape index: {}]
  %s14 = inlined_call_operand.vmem [shape: bf16[64,16], index: 14, kind: input, shape index: {}]
  %s15 = inlined_call_operand.hbm [shape: f32[1,16], index: 15, kind: input, shape index: {}]
  %s16 = inlined_call_operand.vmem [shape: bf16[64,16], index: 16, kind: input, shape index: {}]
  %s17 = inlined_call_operand.hbm [shape: f32[1,16], index: 17, kind: input, shape index: {}]
  %s18 = inlined_call_operand.vmem [shape: bf16[16,128], index: 18, kind: input, shape index: {}]
  %s19 = inlined_call_operand.vmem [shape: f32[1,128], index: 19, kind: input, shape index: {}]
  %s20 = inlined_call_operand.vmem [shape: bf16[16,64], index: 20, kind: input, shape index: {}]
  %s21 = inlined_call_operand.vmem [shape: f32[1,64], index: 21, kind: input, shape index: {}]
  %s22 = inlined_call_operand.vmem [shape: bf16[64,64], index: 22, kind: input, shape index: {}]
  %s23 = inlined_call_operand.vmem [shape: f32[1,64], index: 23, kind: input, shape index: {}]
  %s24 = inlined_call_operand.vmem [shape: bf16[16,128], index: 24, kind: input, shape index: {}]
  %s25 = inlined_call_operand.vmem [shape: f32[1,128], index: 25, kind: input, shape index: {}]
  %s26 = inlined_call_operand.hbm [shape: f32[8,128], index: 26, kind: output, shape index: {0}]
  %s27 = inlined_call_operand.hbm [shape: f32[1,128], index: 27, kind: output, shape index: {1}]
  %28 = xla_tuple %s26, %s27
  %s29 = sld [smem:[#allocation0]]
  $region197: #{tpu_custom_call.1} parent=0
    _
  %s31 = ssub.s32 1, %s29
  %s32 = scalar_select 0, %s31, %s29
  $region1: #{tpu_custom_call.1} parent=0
    #allocation5 [shape = 'u8[65536]{0}', space=vmem, size = 0x10000, scoped, tag = 'input window, operand 2']
    #allocation6 [shape = 's32[2]{0}', space=sflag, size = 0x8, scoped, tag = 'scoped memory for tpu_custom_call.1']
    #allocation7 [shape = 's32[2]{0}', space=sflag, size = 0x8, scoped, tag = 'scoped memory for tpu_custom_call.1']
    #allocation8 [shape = 'u8[1024]{0}', space=vmem, size = 0x400, scoped, tag = 'input window, operand 3']
    #allocation9 [shape = 's32[2]{0}', space=sflag, size = 0x8, scoped, tag = 'scoped memory for tpu_custom_call.1']
    #allocation10 [shape = 'u8[512]{0}', space=vmem, size = 0x400, scoped, tag = 'input window, operand 7, single buffered']
    #allocation11 [shape = 'u8[512]{0}', space=vmem, size = 0x400, scoped, tag = 'input window, operand 9, single buffered']
    #allocation12 [shape = 's32[1]{0}', space=sflag, size = 0x4, scoped, tag = 'scoped memory for tpu_custom_call.1']
    #allocation13 [shape = 'u8[512]{0}', space=vmem, size = 0x400, scoped, tag = 'input window, operand 11, single buffered']
    #allocation14 [shape = 'u8[512]{0}', space=vmem, size = 0x400, scoped, tag = 'input window, operand 13, single buffered']
    #allocation15 [shape = 's32[1]{0}', space=sflag, size = 0x4, scoped, tag = 'scoped memory for tpu_custom_call.1']
    #allocation16 [shape = 'u8[512]{0}', space=vmem, size = 0x400, scoped, tag = 'input window, operand 15, single buffered']
    #allocation17 [shape = 'u8[512]{0}', space=vmem, size = 0x400, scoped, tag = 'input window, operand 17, single buffered']
    #allocation18 [shape = 's32[1]{0}', space=sflag, size = 0x4, scoped, tag = 'scoped memory for tpu_custom_call.1']
    #allocation19 [shape = 'u8[4096]{0}', space=vmem, size = 0x1000, scoped, tag = 'output window, operand 0, single buffered']
    #allocation20 [shape = 'u8[512]{0}', space=vmem, size = 0x400, scoped, tag = 'output window, operand 1, single buffered']
    #allocation21 [shape = 's32[1]{0}', space=sflag, size = 0x4, scoped, tag = 'scoped memory for tpu_custom_call.1']
    %33 = vsyncpa [#allocation6], 0
    %s34 = scalar_lea.sflag [#allocation6], 1
    %35 = vsyncpa %s34, 0
    %36 = vsyncpa [#allocation9], 0
    %s37 = scalar_lea.sflag [#allocation9], 1
    %38 = vsyncpa %s37, 0
    %39 = vsyncpa [#allocation12], 0
    %40 = vsyncpa [#allocation15], 0
    %41 = vsyncpa [#allocation18], 0
    %42 = vsyncpa [#allocation7], 0
    %43 = vsyncpa [#allocation21], 0
    loop: start=0, step=1, limit=6
    $region2: #{tpu_custom_call.1} parent=1 // loop_pre_header
      _
    $region3: #{tpu_custom_call.1} parent=1 // loop_header
      %s45 = sphi 0, %s49
      %p46 = scmp.ge.s32.totalorder %s45, 6
      %s52 = sphi 0, %s64
      %s53 = sphi 0, %s60
      %s54 = sphi 0, %s52
      %s55 = sphi 0, %s53
      %s56 = sphi 0, %s54
      %s57 = sphi 0, %s55
      %s67 = sphi 0, %s69
      %s70 = sphi 0, %s67
      %s71 = sphi 0, %s70
      %s87 = sphi 0, %s71
      %s99 = sphi 0, %s101
      %s102 = sphi 0, %s99
      %s103 = sphi 0, %s102
      %s119 = sphi 0, %s103
      %s127 = sphi 0, %s129
      %s130 = sphi 0, %s127
      %s131 = sphi 0, %s130
      %s147 = sphi 0, %s131
      %s155 = sphi 0, %s157
      %s158 = sphi 0, %s155
      %s159 = sphi 0, %s158
      %s175 = sphi 0, %s159
      %s179 = sphi 0, %s179
      %s181 = sphi 0, %s179
      %s182 = sphi 0, %s181
      %s196 = sphi 0, %s182
      %s200 = sphi 0, %s200
      %s202 = sphi 0, %s200
      %s203 = sphi 0, %s202
      %s217 = sphi 0, %s203
      %s221 = sphi 0, %s221
      %s223 = sphi 0, %s221
      %s224 = sphi 0, %s223
      %s238 = sphi 0, %s224
      %s242 = sphi 0, %s242
      %s244 = sphi 0, %s242
      %s245 = sphi 0, %s244
      %s259 = sphi 0, %s245
      %s263 = sphi 0, %s263
      %s265 = sphi 0, %s263
      %s266 = sphi 0, %s265
      %s280 = sphi 0, %s266
      %s284 = sphi 0, %s284
      %s286 = sphi 0, %s284
      %s287 = sphi 0, %s286
      %s301 = sphi 0, %s287
      %s305 = sphi 0, %s305
      %s307 = sphi 0, %s305
      %s308 = sphi 0, %s307
      %s322 = sphi 0, %s308
      %s326 = sphi 0, %s326
      %s328 = sphi 0, %s326
      %s329 = sphi 0, %s328
      %s343 = sphi 0, %s329
      %s347 = sphi 0, %s347
      %s349 = sphi 0, %s347
      %s350 = sphi 0, %s349
      %s364 = sphi 0, %s350
      %s368 = sphi 0, %s368
      %s370 = sphi 0, %s368
      %s371 = sphi 0, %s370
      %s385 = sphi 0, %s371
      %s389 = sphi 0, %s389
      %s391 = sphi 0, %s389
      %s392 = sphi 0, %s391
      %s406 = sphi 0, %s392
      %s410 = sphi 0, %s410
      %s412 = sphi 0, %s410
      %s413 = sphi 0, %s412
      %s427 = sphi 0, %s413
      %s431 = sphi 0, %s431
      %s433 = sphi 0, %s431
      %s434 = sphi 0, %s433
      %s448 = sphi 0, %s434
      %s452 = sphi 0, %s452
      %s454 = sphi 0, %s452
      %s455 = sphi 0, %s454
      %s469 = sphi 0, %s455
      %s473 = sphi 0, %s473
      %s475 = sphi 0, %s473
      %s476 = sphi 0, %s475
      %s490 = sphi 0, %s476
      %s494 = sphi 0, %s494
      %s496 = sphi 0, %s494
      %s497 = sphi 0, %s496
      %s511 = sphi 0, %s497
      %s515 = sphi 0, %s515
      %s517 = sphi 0, %s515
      %s518 = sphi 0, %s517
      %s532 = sphi 0, %s518
      %s536 = sphi 0, %s536
      %s538 = sphi 0, %s536
      %s539 = sphi 0, %s538
      %s553 = sphi 0, %s539
      %s557 = sphi 0, %s557
      %s559 = sphi 0, %s557
      %s560 = sphi 0, %s559
      %s574 = sphi 0, %s560
      %s578 = sphi 0, %s578
      %s580 = sphi 0, %s578
      %s581 = sphi 0, %s580
      %s595 = sphi 0, %s581
      %s599 = sphi 0, %s599
      %s601 = sphi 0, %s599
      %s602 = sphi 0, %s601
      %s616 = sphi 0, %s602
      %s620 = sphi 0, %s620
      %s622 = sphi 0, %s620
      %s623 = sphi 0, %s622
      %s637 = sphi 0, %s623
      %s641 = sphi 0, %s641
      %s643 = sphi 0, %s641
      %s644 = sphi 0, %s643
      %s658 = sphi 0, %s644
      %s662 = sphi 0, %s662
      %s664 = sphi 0, %s662
      %s665 = sphi 0, %s664
      %s679 = sphi 0, %s665
    $region4: #{tpu_custom_call.1} parent=1 // loop_header_branch
      %48 = sbr.rel (%p46) target = $region8
    $region5: #{tpu_custom_call.1} parent=1 // loop_body
      %s50 = ssub.s32 %s45, 1
      %s51 = ssub.s32 %s45, 2
      %s58 = sadd.s32 1, %s53
      %p59 = scmp.ge.s32.totalorder %s58, 2
      %s60 = scalar_select %p59, 0, %s58
      %s61 = sadd.s32 1, %s52
      %s62 = scalar_select %p59, %s61, %s52
      %p63 = scmp.ge.s32.totalorder %s62, 2
      %s64 = scalar_select %p63, 0, %s62
      %s65 = ssub.s32 %s53, %s60
      %p66 = scmp.eq.s32.totalorder %s65, 0
      %s68 = sadd.s32 %s67, 1
      %s69 = scalar_select %p66, %s67, %s68
      %p72 = pneg %p66
      %p73 = scmp.eq.s32.totalorder %s45, 3
      %p74 = por %p72, %p73
      %p75 = scmp.ne.s32.totalorder %s67, %s70
      %p76 = scmp.eq.s32.totalorder %s45, 0
      %p77 = por %p75, %p76
      %p78 = scmp.ne.s32.totalorder %s67, %s70
      %p79 = scmp.eq.s32.totalorder %s50, 3
      %p80 = por %p78, %p79
      %p81 = scmp.ne.s32.totalorder %s70, %s71
      %p82 = scmp.eq.s32.totalorder %s50, 0
      %p83 = por %p81, %p82
      %p84 = scmp.ne.s32.totalorder %s70, %s71
      %p85 = scmp.eq.s32.totalorder %s51, 3
      %p86 = por %p84, %p85
      %p88 = scmp.ne.s32.totalorder %s71, %s87
      %p89 = scmp.eq.s32.totalorder %s51, 0
      %p90 = por %p88, %p89
      %s91 = ssub.s32 1, %s52
      %s92 = smul.u32 %s91, %s53
      %s93 = sadd.s32 %s92, %s52
      %s94 = ssub.s32 1, %s64
      %s95 = smul.u32 %s94, %s60
      %s96 = sadd.s32 %s95, %s64
      %s97 = ssub.s32 %s93, %s96
      %p98 = scmp.eq.s32.totalorder %s97, 0
      %s100 = sadd.s32 %s99, 1
      %s101 = scalar_select %p98, %s99, %s100
      %p104 = pneg %p98
      %p105 = scmp.eq.s32.totalorder %s45, 3
      %p106 = por %p104, %p105
      %p107 = scmp.ne.s32.totalorder %s99, %s102
      %p108 = scmp.eq.s32.totalorder %s45, 0
      %p109 = por %p107, %p108
      %p110 = scmp.ne.s32.totalorder %s99, %s102
      %p111 = scmp.eq.s32.totalorder %s50, 3
      %p112 = por %p110, %p111
      %p113 = scmp.ne.s32.totalorder %s102, %s103
      %p114 = scmp.eq.s32.totalorder %s50, 0
      %p115 = por %p113, %p114
      %p116 = scmp.ne.s32.totalorder %s102, %s103
      %p117 = scmp.eq.s32.totalorder %s51, 3
      %p118 = por %p116, %p117
      %p120 = scmp.ne.s32.totalorder %s103, %s119
      %p121 = scmp.eq.s32.totalorder %s51, 0
      %p122 = por %p120, %p121
      %s123 = smul.u32 %s52, %s53
      %s124 = smul.u32 %s64, %s60
      %s125 = ssub.s32 %s123, %s124
      %p126 = scmp.eq.s32.totalorder %s125, 0
      %s128 = sadd.s32 %s127, 1
      %s129 = scalar_select %p126, %s127, %s128
      %p132 = pneg %p126
      %p133 = scmp.eq.s32.totalorder %s45, 3
      %p134 = por %p132, %p133
      %p135 = scmp.ne.s32.totalorder %s127, %s130
      %p136 = scmp.eq.s32.totalorder %s45, 0
      %p137 = por %p135, %p136
      %p138 = scmp.ne.s32.totalorder %s127, %s130
      %p139 = scmp.eq.s32.totalorder %s50, 3
      %p140 = por %p138, %p139
      %p141 = scmp.ne.s32.totalorder %s130, %s131
      %p142 = scmp.eq.s32.totalorder %s50, 0
      %p143 = por %p141, %p142
      %p144 = scmp.ne.s32.totalorder %s130, %s131
      %p145 = scmp.eq.s32.totalorder %s51, 3
      %p146 = por %p144, %p145
      %p148 = scmp.ne.s32.totalorder %s131, %s147
      %p149 = scmp.eq.s32.totalorder %s51, 0
      %p150 = por %p148, %p149
      %s151 = smul.u32 %s52, %s53
      %s152 = smul.u32 %s64, %s60
      %s153 = ssub.s32 %s151, %s152
      %p154 = scmp.eq.s32.totalorder %s153, 0
      %s156 = sadd.s32 %s155, 1
      %s157 = scalar_select %p154, %s155, %s156
      %p160 = pneg %p154
      %p161 = scmp.eq.s32.totalorder %s45, 3
      %p162 = por %p160, %p161
      %p163 = scmp.ne.s32.totalorder %s155, %s158
      %p164 = scmp.eq.s32.totalorder %s45, 0
      %p165 = por %p163, %p164
      %p166 = scmp.ne.s32.totalorder %s155, %s158
      %p167 = scmp.eq.s32.totalorder %s50, 3
      %p168 = por %p166, %p167
      %p169 = scmp.ne.s32.totalorder %s158, %s159
      %p170 = scmp.eq.s32.totalorder %s50, 0
      %p171 = por %p169, %p170
      %p172 = scmp.ne.s32.totalorder %s158, %s159
      %p173 = scmp.eq.s32.totalorder %s51, 3
      %p174 = por %p172, %p173
      %p176 = scmp.ne.s32.totalorder %s159, %s175
      %p177 = scmp.eq.s32.totalorder %s51, 0
      %p178 = por %p176, %p177
      %s180 = sadd.s32 %s179, 1
      %p183 = scmp.eq.s32.totalorder %s45, 3
      %p184 = scmp.ne.s32.totalorder %s179, %s181
      %p185 = scmp.eq.s32.totalorder %s45, 0
      %p186 = por %p184, %p185
      %p187 = scmp.ne.s32.totalorder %s179, %s181
      %p188 = scmp.eq.s32.totalorder %s50, 3
      %p189 = por %p187, %p188
      %p190 = scmp.ne.s32.totalorder %s181, %s182
      %p191 = scmp.eq.s32.totalorder %s50, 0
      %p192 = por %p190, %p191
      %p193 = scmp.ne.s32.totalorder %s181, %s182
      %p194 = scmp.eq.s32.totalorder %s51, 3
      %p195 = por %p193, %p194
      %p197 = scmp.ne.s32.totalorder %s182, %s196
      %p198 = scmp.eq.s32.totalorder %s51, 0
      %p199 = por %p197, %p198
      %s201 = sadd.s32 %s200, 1
      %p204 = scmp.eq.s32.totalorder %s45, 3
      %p205 = scmp.ne.s32.totalorder %s200, %s202
      %p206 = scmp.eq.s32.totalorder %s45, 0
      %p207 = por %p205, %p206
      %p208 = scmp.ne.s32.totalorder %s200, %s202
      %p209 = scmp.eq.s32.totalorder %s50, 3
      %p210 = por %p208, %p209
      %p211 = scmp.ne.s32.totalorder %s202, %s203
      %p212 = scmp.eq.s32.totalorder %s50, 0
      %p213 = por %p211, %p212
      %p214 = scmp.ne.s32.totalorder %s202, %s203
      %p215 = scmp.eq.s32.totalorder %s51, 3
      %p216 = por %p214, %p215
      %p218 = scmp.ne.s32.totalorder %s203, %s217
      %p219 = scmp.eq.s32.totalorder %s51, 0
      %p220 = por %p218, %p219
      %s222 = sadd.s32 %s221, 1
      %p225 = scmp.eq.s32.totalorder %s45, 3
      %p226 = scmp.ne.s32.totalorder %s221, %s223
      %p227 = scmp.eq.s32.totalorder %s45, 0
      %p228 = por %p226, %p227
      %p229 = scmp.ne.s32.totalorder %s221, %s223
      %p230 = scmp.eq.s32.totalorder %s50, 3
      %p231 = por %p229, %p230
      %p232 = scmp.ne.s32.totalorder %s223, %s224
      %p233 = scmp.eq.s32.totalorder %s50, 0
      %p234 = por %p232, %p233
      %p235 = scmp.ne.s32.totalorder %s223, %s224
      %p236 = scmp.eq.s32.totalorder %s51, 3
      %p237 = por %p235, %p236
      %p239 = scmp.ne.s32.totalorder %s224, %s238
      %p240 = scmp.eq.s32.totalorder %s51, 0
      %p241 = por %p239, %p240
      %s243 = sadd.s32 %s242, 1
      %p246 = scmp.eq.s32.totalorder %s45, 3
      %p247 = scmp.ne.s32.totalorder %s242, %s244
      %p248 = scmp.eq.s32.totalorder %s45, 0
      %p249 = por %p247, %p248
      %p250 = scmp.ne.s32.totalorder %s242, %s244
      %p251 = scmp.eq.s32.totalorder %s50, 3
      %p252 = por %p250, %p251
      %p253 = scmp.ne.s32.totalorder %s244, %s245
      %p254 = scmp.eq.s32.totalorder %s50, 0
      %p255 = por %p253, %p254
      %p256 = scmp.ne.s32.totalorder %s244, %s245
      %p257 = scmp.eq.s32.totalorder %s51, 3
      %p258 = por %p256, %p257
      %p260 = scmp.ne.s32.totalorder %s245, %s259
      %p261 = scmp.eq.s32.totalorder %s51, 0
      %p262 = por %p260, %p261
      %s264 = sadd.s32 %s263, 1
      %p267 = scmp.eq.s32.totalorder %s45, 3
      %p268 = scmp.ne.s32.totalorder %s263, %s265
      %p269 = scmp.eq.s32.totalorder %s45, 0
      %p270 = por %p268, %p269
      %p271 = scmp.ne.s32.totalorder %s263, %s265
      %p272 = scmp.eq.s32.totalorder %s50, 3
      %p273 = por %p271, %p272
      %p274 = scmp.ne.s32.totalorder %s265, %s266
      %p275 = scmp.eq.s32.totalorder %s50, 0
      %p276 = por %p274, %p275
      %p277 = scmp.ne.s32.totalorder %s265, %s266
      %p278 = scmp.eq.s32.totalorder %s51, 3
      %p279 = por %p277, %p278
      %p281 = scmp.ne.s32.totalorder %s266, %s280
      %p282 = scmp.eq.s32.totalorder %s51, 0
      %p283 = por %p281, %p282
      %s285 = sadd.s32 %s284, 1
      %p288 = scmp.eq.s32.totalorder %s45, 3
      %p289 = scmp.ne.s32.totalorder %s284, %s286
      %p290 = scmp.eq.s32.totalorder %s45, 0
      %p291 = por %p289, %p290
      %p292 = scmp.ne.s32.totalorder %s284, %s286
      %p293 = scmp.eq.s32.totalorder %s50, 3
      %p294 = por %p292, %p293
      %p295 = scmp.ne.s32.totalorder %s286, %s287
      %p296 = scmp.eq.s32.totalorder %s50, 0
      %p297 = por %p295, %p296
      %p298 = scmp.ne.s32.totalorder %s286, %s287
      %p299 = scmp.eq.s32.totalorder %s51, 3
      %p300 = por %p298, %p299
      %p302 = scmp.ne.s32.totalorder %s287, %s301
      %p303 = scmp.eq.s32.totalorder %s51, 0
      %p304 = por %p302, %p303
      %s306 = sadd.s32 %s305, 1
      %p309 = scmp.eq.s32.totalorder %s45, 3
      %p310 = scmp.ne.s32.totalorder %s305, %s307
      %p311 = scmp.eq.s32.totalorder %s45, 0
      %p312 = por %p310, %p311
      %p313 = scmp.ne.s32.totalorder %s305, %s307
      %p314 = scmp.eq.s32.totalorder %s50, 3
      %p315 = por %p313, %p314
      %p316 = scmp.ne.s32.totalorder %s307, %s308
      %p317 = scmp.eq.s32.totalorder %s50, 0
      %p318 = por %p316, %p317
      %p319 = scmp.ne.s32.totalorder %s307, %s308
      %p320 = scmp.eq.s32.totalorder %s51, 3
      %p321 = por %p319, %p320
      %p323 = scmp.ne.s32.totalorder %s308, %s322
      %p324 = scmp.eq.s32.totalorder %s51, 0
      %p325 = por %p323, %p324
      %s327 = sadd.s32 %s326, 1
      %p330 = scmp.eq.s32.totalorder %s45, 3
      %p331 = scmp.ne.s32.totalorder %s326, %s328
      %p332 = scmp.eq.s32.totalorder %s45, 0
      %p333 = por %p331, %p332
      %p334 = scmp.ne.s32.totalorder %s326, %s328
      %p335 = scmp.eq.s32.totalorder %s50, 3
      %p336 = por %p334, %p335
      %p337 = scmp.ne.s32.totalorder %s328, %s329
      %p338 = scmp.eq.s32.totalorder %s50, 0
      %p339 = por %p337, %p338
      %p340 = scmp.ne.s32.totalorder %s328, %s329
      %p341 = scmp.eq.s32.totalorder %s51, 3
      %p342 = por %p340, %p341
      %p344 = scmp.ne.s32.totalorder %s329, %s343
      %p345 = scmp.eq.s32.totalorder %s51, 0
      %p346 = por %p344, %p345
      %s348 = sadd.s32 %s347, 1
      %p351 = scmp.eq.s32.totalorder %s45, 3
      %p352 = scmp.ne.s32.totalorder %s347, %s349
      %p353 = scmp.eq.s32.totalorder %s45, 0
      %p354 = por %p352, %p353
      %p355 = scmp.ne.s32.totalorder %s347, %s349
      %p356 = scmp.eq.s32.totalorder %s50, 3
      %p357 = por %p355, %p356
      %p358 = scmp.ne.s32.totalorder %s349, %s350
      %p359 = scmp.eq.s32.totalorder %s50, 0
      %p360 = por %p358, %p359
      %p361 = scmp.ne.s32.totalorder %s349, %s350
      %p362 = scmp.eq.s32.totalorder %s51, 3
      %p363 = por %p361, %p362
      %p365 = scmp.ne.s32.totalorder %s350, %s364
      %p366 = scmp.eq.s32.totalorder %s51, 0
      %p367 = por %p365, %p366
      %s369 = sadd.s32 %s368, 1
      %p372 = scmp.eq.s32.totalorder %s45, 3
      %p373 = scmp.ne.s32.totalorder %s368, %s370
      %p374 = scmp.eq.s32.totalorder %s45, 0
      %p375 = por %p373, %p374
      %p376 = scmp.ne.s32.totalorder %s368, %s370
      %p377 = scmp.eq.s32.totalorder %s50, 3
      %p378 = por %p376, %p377
      %p379 = scmp.ne.s32.totalorder %s370, %s371
      %p380 = scmp.eq.s32.totalorder %s50, 0
      %p381 = por %p379, %p380
      %p382 = scmp.ne.s32.totalorder %s370, %s371
      %p383 = scmp.eq.s32.totalorder %s51, 3
      %p384 = por %p382, %p383
      %p386 = scmp.ne.s32.totalorder %s371, %s385
      %p387 = scmp.eq.s32.totalorder %s51, 0
      %p388 = por %p386, %p387
      %s390 = sadd.s32 %s389, 1
      %p393 = scmp.eq.s32.totalorder %s45, 3
      %p394 = scmp.ne.s32.totalorder %s389, %s391
      %p395 = scmp.eq.s32.totalorder %s45, 0
      %p396 = por %p394, %p395
      %p397 = scmp.ne.s32.totalorder %s389, %s391
      %p398 = scmp.eq.s32.totalorder %s50, 3
      %p399 = por %p397, %p398
      %p400 = scmp.ne.s32.totalorder %s391, %s392
      %p401 = scmp.eq.s32.totalorder %s50, 0
      %p402 = por %p400, %p401
      %p403 = scmp.ne.s32.totalorder %s391, %s392
      %p404 = scmp.eq.s32.totalorder %s51, 3
      %p405 = por %p403, %p404
      %p407 = scmp.ne.s32.totalorder %s392, %s406
      %p408 = scmp.eq.s32.totalorder %s51, 0
      %p409 = por %p407, %p408
      %s411 = sadd.s32 %s410, 1
      %p414 = scmp.eq.s32.totalorder %s45, 3
      %p415 = scmp.ne.s32.totalorder %s410, %s412
      %p416 = scmp.eq.s32.totalorder %s45, 0
      %p417 = por %p415, %p416
      %p418 = scmp.ne.s32.totalorder %s410, %s412
      %p419 = scmp.eq.s32.totalorder %s50, 3
      %p420 = por %p418, %p419
      %p421 = scmp.ne.s32.totalorder %s412, %s413
      %p422 = scmp.eq.s32.totalorder %s50, 0
      %p423 = por %p421, %p422
      %p424 = scmp.ne.s32.totalorder %s412, %s413
      %p425 = scmp.eq.s32.totalorder %s51, 3
      %p426 = por %p424, %p425
      %p428 = scmp.ne.s32.totalorder %s413, %s427
      %p429 = scmp.eq.s32.totalorder %s51, 0
      %p430 = por %p428, %p429
      %s432 = sadd.s32 %s431, 1
      %p435 = scmp.eq.s32.totalorder %s45, 3
      %p436 = scmp.ne.s32.totalorder %s431, %s433
      %p437 = scmp.eq.s32.totalorder %s45, 0
      %p438 = por %p436, %p437
      %p439 = scmp.ne.s32.totalorder %s431, %s433
      %p440 = scmp.eq.s32.totalorder %s50, 3
      %p441 = por %p439, %p440
      %p442 = scmp.ne.s32.totalorder %s433, %s434
      %p443 = scmp.eq.s32.totalorder %s50, 0
      %p444 = por %p442, %p443
      %p445 = scmp.ne.s32.totalorder %s433, %s434
      %p446 = scmp.eq.s32.totalorder %s51, 3
      %p447 = por %p445, %p446
      %p449 = scmp.ne.s32.totalorder %s434, %s448
      %p450 = scmp.eq.s32.totalorder %s51, 0
      %p451 = por %p449, %p450
      %s453 = sadd.s32 %s452, 1
      %p456 = scmp.eq.s32.totalorder %s45, 3
      %p457 = scmp.ne.s32.totalorder %s452, %s454
      %p458 = scmp.eq.s32.totalorder %s45, 0
      %p459 = por %p457, %p458
      %p460 = scmp.ne.s32.totalorder %s452, %s454
      %p461 = scmp.eq.s32.totalorder %s50, 3
      %p462 = por %p460, %p461
      %p463 = scmp.ne.s32.totalorder %s454, %s455
      %p464 = scmp.eq.s32.totalorder %s50, 0
      %p465 = por %p463, %p464
      %p466 = scmp.ne.s32.totalorder %s454, %s455
      %p467 = scmp.eq.s32.totalorder %s51, 3
      %p468 = por %p466, %p467
      %p470 = scmp.ne.s32.totalorder %s455, %s469
      %p471 = scmp.eq.s32.totalorder %s51, 0
      %p472 = por %p470, %p471
      %s474 = sadd.s32 %s473, 1
      %p477 = scmp.eq.s32.totalorder %s45, 3
      %p478 = scmp.ne.s32.totalorder %s473, %s475
      %p479 = scmp.eq.s32.totalorder %s45, 0
      %p480 = por %p478, %p479
      %p481 = scmp.ne.s32.totalorder %s473, %s475
      %p482 = scmp.eq.s32.totalorder %s50, 3
      %p483 = por %p481, %p482
      %p484 = scmp.ne.s32.totalorder %s475, %s476
      %p485 = scmp.eq.s32.totalorder %s50, 0
      %p486 = por %p484, %p485
      %p487 = scmp.ne.s32.totalorder %s475, %s476
      %p488 = scmp.eq.s32.totalorder %s51, 3
      %p489 = por %p487, %p488
      %p491 = scmp.ne.s32.totalorder %s476, %s490
      %p492 = scmp.eq.s32.totalorder %s51, 0
      %p493 = por %p491, %p492
      %s495 = sadd.s32 %s494, 1
      %p498 = scmp.eq.s32.totalorder %s45, 3
      %p499 = scmp.ne.s32.totalorder %s494, %s496
      %p500 = scmp.eq.s32.totalorder %s45, 0
      %p501 = por %p499, %p500
      %p502 = scmp.ne.s32.totalorder %s494, %s496
      %p503 = scmp.eq.s32.totalorder %s50, 3
      %p504 = por %p502, %p503
      %p505 = scmp.ne.s32.totalorder %s496, %s497
      %p506 = scmp.eq.s32.totalorder %s50, 0
      %p507 = por %p505, %p506
      %p508 = scmp.ne.s32.totalorder %s496, %s497
      %p509 = scmp.eq.s32.totalorder %s51, 3
      %p510 = por %p508, %p509
      %p512 = scmp.ne.s32.totalorder %s497, %s511
      %p513 = scmp.eq.s32.totalorder %s51, 0
      %p514 = por %p512, %p513
      %s516 = sadd.s32 %s515, 1
      %p519 = scmp.eq.s32.totalorder %s45, 3
      %p520 = scmp.ne.s32.totalorder %s515, %s517
      %p521 = scmp.eq.s32.totalorder %s45, 0
      %p522 = por %p520, %p521
      %p523 = scmp.ne.s32.totalorder %s515, %s517
      %p524 = scmp.eq.s32.totalorder %s50, 3
      %p525 = por %p523, %p524
      %p526 = scmp.ne.s32.totalorder %s517, %s518
      %p527 = scmp.eq.s32.totalorder %s50, 0
      %p528 = por %p526, %p527
      %p529 = scmp.ne.s32.totalorder %s517, %s518
      %p530 = scmp.eq.s32.totalorder %s51, 3
      %p531 = por %p529, %p530
      %p533 = scmp.ne.s32.totalorder %s518, %s532
      %p534 = scmp.eq.s32.totalorder %s51, 0
      %p535 = por %p533, %p534
      %s537 = sadd.s32 %s536, 1
      %p540 = scmp.eq.s32.totalorder %s45, 3
      %p541 = scmp.ne.s32.totalorder %s536, %s538
      %p542 = scmp.eq.s32.totalorder %s45, 0
      %p543 = por %p541, %p542
      %p544 = scmp.ne.s32.totalorder %s536, %s538
      %p545 = scmp.eq.s32.totalorder %s50, 3
      %p546 = por %p544, %p545
      %p547 = scmp.ne.s32.totalorder %s538, %s539
      %p548 = scmp.eq.s32.totalorder %s50, 0
      %p549 = por %p547, %p548
      %p550 = scmp.ne.s32.totalorder %s538, %s539
      %p551 = scmp.eq.s32.totalorder %s51, 3
      %p552 = por %p550, %p551
      %p554 = scmp.ne.s32.totalorder %s539, %s553
      %p555 = scmp.eq.s32.totalorder %s51, 0
      %p556 = por %p554, %p555
      %s558 = sadd.s32 %s557, 1
      %p561 = scmp.eq.s32.totalorder %s45, 3
      %p562 = scmp.ne.s32.totalorder %s557, %s559
      %p563 = scmp.eq.s32.totalorder %s45, 0
      %p564 = por %p562, %p563
      %p565 = scmp.ne.s32.totalorder %s557, %s559
      %p566 = scmp.eq.s32.totalorder %s50, 3
      %p567 = por %p565, %p566
      %p568 = scmp.ne.s32.totalorder %s559, %s560
      %p569 = scmp.eq.s32.totalorder %s50, 0
      %p570 = por %p568, %p569
      %p571 = scmp.ne.s32.totalorder %s559, %s560
      %p572 = scmp.eq.s32.totalorder %s51, 3
      %p573 = por %p571, %p572
      %p575 = scmp.ne.s32.totalorder %s560, %s574
      %p576 = scmp.eq.s32.totalorder %s51, 0
      %p577 = por %p575, %p576
      %s579 = sadd.s32 %s578, 1
      %p582 = scmp.eq.s32.totalorder %s45, 3
      %p583 = scmp.ne.s32.totalorder %s578, %s580
      %p584 = scmp.eq.s32.totalorder %s45, 0
      %p585 = por %p583, %p584
      %p586 = scmp.ne.s32.totalorder %s578, %s580
      %p587 = scmp.eq.s32.totalorder %s50, 3
      %p588 = por %p586, %p587
      %p589 = scmp.ne.s32.totalorder %s580, %s581
      %p590 = scmp.eq.s32.totalorder %s50, 0
      %p591 = por %p589, %p590
      %p592 = scmp.ne.s32.totalorder %s580, %s581
      %p593 = scmp.eq.s32.totalorder %s51, 3
      %p594 = por %p592, %p593
      %p596 = scmp.ne.s32.totalorder %s581, %s595
      %p597 = scmp.eq.s32.totalorder %s51, 0
      %p598 = por %p596, %p597
      %s600 = sadd.s32 %s599, 1
      %p603 = scmp.eq.s32.totalorder %s45, 3
      %p604 = scmp.ne.s32.totalorder %s599, %s601
      %p605 = scmp.eq.s32.totalorder %s45, 0
      %p606 = por %p604, %p605
      %p607 = scmp.ne.s32.totalorder %s599, %s601
      %p608 = scmp.eq.s32.totalorder %s50, 3
      %p609 = por %p607, %p608
      %p610 = scmp.ne.s32.totalorder %s601, %s602
      %p611 = scmp.eq.s32.totalorder %s50, 0
      %p612 = por %p610, %p611
      %p613 = scmp.ne.s32.totalorder %s601, %s602
      %p614 = scmp.eq.s32.totalorder %s51, 3
      %p615 = por %p613, %p614
      %p617 = scmp.ne.s32.totalorder %s602, %s616
      %p618 = scmp.eq.s32.totalorder %s51, 0
      %p619 = por %p617, %p618
      %s621 = sadd.s32 %s620, 1
      %p624 = scmp.eq.s32.totalorder %s45, 3
      %p625 = scmp.ne.s32.totalorder %s620, %s622
      %p626 = scmp.eq.s32.totalorder %s45, 0
      %p627 = por %p625, %p626
      %p628 = scmp.ne.s32.totalorder %s620, %s622
      %p629 = scmp.eq.s32.totalorder %s50, 3
      %p630 = por %p628, %p629
      %p631 = scmp.ne.s32.totalorder %s622, %s623
      %p632 = scmp.eq.s32.totalorder %s50, 0
      %p633 = por %p631, %p632
      %p634 = scmp.ne.s32.totalorder %s622, %s623
      %p635 = scmp.eq.s32.totalorder %s51, 3
      %p636 = por %p634, %p635
      %p638 = scmp.ne.s32.totalorder %s623, %s637
      %p639 = scmp.eq.s32.totalorder %s51, 0
      %p640 = por %p638, %p639
      %s642 = sadd.s32 %s641, 1
      %p645 = scmp.eq.s32.totalorder %s45, 3
      %p646 = scmp.ne.s32.totalorder %s641, %s643
      %p647 = scmp.eq.s32.totalorder %s45, 0
      %p648 = por %p646, %p647
      %p649 = scmp.ne.s32.totalorder %s641, %s643
      %p650 = scmp.eq.s32.totalorder %s50, 3
      %p651 = por %p649, %p650
      %p652 = scmp.ne.s32.totalorder %s643, %s644
      %p653 = scmp.eq.s32.totalorder %s50, 0
      %p654 = por %p652, %p653
      %p655 = scmp.ne.s32.totalorder %s643, %s644
      %p656 = scmp.eq.s32.totalorder %s51, 3
      %p657 = por %p655, %p656
      %p659 = scmp.ne.s32.totalorder %s644, %s658
      %p660 = scmp.eq.s32.totalorder %s51, 0
      %p661 = por %p659, %p660
      %s663 = sadd.s32 %s662, 1
      %p666 = scmp.eq.s32.totalorder %s45, 3
      %p667 = scmp.ne.s32.totalorder %s662, %s664
      %p668 = scmp.eq.s32.totalorder %s45, 0
      %p669 = por %p667, %p668
      %p670 = scmp.ne.s32.totalorder %s662, %s664
      %p671 = scmp.eq.s32.totalorder %s50, 3
      %p672 = por %p670, %p671
      %p673 = scmp.ne.s32.totalorder %s664, %s665
      %p674 = scmp.eq.s32.totalorder %s50, 0
      %p675 = por %p673, %p674
      %p676 = scmp.ne.s32.totalorder %s664, %s665
      %p677 = scmp.eq.s32.totalorder %s51, 3
      %p678 = por %p676, %p677
      %p680 = scmp.ne.s32.totalorder %s665, %s679
      %p681 = scmp.eq.s32.totalorder %s51, 0
      %p682 = por %p680, %p681
      %p683 = scmp.le.s32.totalorder 1, %s45
      %p684 = scmp.lt.s32.totalorder %s45, 5
      %p685 = pnand %p683, %p684
      %p686 = pneg %p685
      // Predicated region
      $region9: #{tpu_custom_call.1} parent=5 // pred_check
        _
      $region10: #{tpu_custom_call.1} parent=5 // pred_check_branch
        %688 = sbr.rel (%p685) target = $region12
      $region11: #{tpu_custom_call.1} parent=5 // pred_region
        %s689 = ssub.s32 %s45, 1
        // Predicated region
        $region13: #{tpu_custom_call.1} parent=11 // pred_check
          %p690 = pneg %p192
        $region14: #{tpu_custom_call.1} parent=11 // pred_check_branch
          %692 = sbr.rel (%p690) target = $region16
        $region15: #{tpu_custom_call.1} parent=11 // pred_region
          _
        $region16: #{tpu_custom_call.1} parent=11 // pred_fallthru
          _
        // Predicated region
        $region17: #{tpu_custom_call.1} parent=11 // pred_check
          %p693 = pneg %p213
        $region18: #{tpu_custom_call.1} parent=11 // pred_check_branch
          %695 = sbr.rel (%p693) target = $region20
        $region19: #{tpu_custom_call.1} parent=11 // pred_region
          _
        $region20: #{tpu_custom_call.1} parent=11 // pred_fallthru
          _
        // Predicated region
        $region21: #{tpu_custom_call.1} parent=11 // pred_check
          %p696 = pneg %p234
        $region22: #{tpu_custom_call.1} parent=11 // pred_check_branch
          %698 = sbr.rel (%p696) target = $region24
        $region23: #{tpu_custom_call.1} parent=11 // pred_region
          _
        $region24: #{tpu_custom_call.1} parent=11 // pred_fallthru
          _
        // Predicated region
        $region25: #{tpu_custom_call.1} parent=11 // pred_check
          %p699 = pneg %p255
        $region26: #{tpu_custom_call.1} parent=11 // pred_check_branch
          %701 = sbr.rel (%p699) target = $region28
        $region27: #{tpu_custom_call.1} parent=11 // pred_region
          %703 = vsyncadd [#allocation9], 0
          %s705 = sshll.u32 %s7, 4
          %s706 = int_to_ptr.hbm [resolvable:$true] %s705
          %s707 = sshll.u32 [#allocation10], 4
          %s708 = int_to_ptr.vmem [resolvable:$true] %s707
          %710 = dma.hbm_to_vmem [thread:$0]  %s706, 16, %s708, [#allocation9]
        $region28: #{tpu_custom_call.1} parent=11 // pred_fallthru
          _
        // Predicated region
        $region29: #{tpu_custom_call.1} parent=11 // pred_check
          %p711 = pneg %p276
        $region30: #{tpu_custom_call.1} parent=11 // pred_check_branch
          %713 = sbr.rel (%p711) target = $region32
        $region31: #{tpu_custom_call.1} parent=11 // pred_region
          _
        $region32: #{tpu_custom_call.1} parent=11 // pred_fallthru
          _
        // Predicated region
        $region33: #{tpu_custom_call.1} parent=11 // pred_check
          %p714 = pneg %p297
        $region34: #{tpu_custom_call.1} parent=11 // pred_check_branch
          %716 = sbr.rel (%p714) target = $region36
        $region35: #{tpu_custom_call.1} parent=11 // pred_region
          %718 = vsyncadd [#allocation12], 0
          %s720 = sshll.u32 %s9, 4
          %s721 = int_to_ptr.hbm [resolvable:$true] %s720
          %s722 = sshll.u32 [#allocation11], 4
          %s723 = int_to_ptr.vmem [resolvable:$true] %s722
          %725 = dma.hbm_to_vmem [thread:$0]  %s721, 16, %s723, [#allocation12]
        $region36: #{tpu_custom_call.1} parent=11 // pred_fallthru
          _
        // Predicated region
        $region37: #{tpu_custom_call.1} parent=11 // pred_check
          %p726 = pneg %p318
        $region38: #{tpu_custom_call.1} parent=11 // pred_check_branch
          %728 = sbr.rel (%p726) target = $region40
        $region39: #{tpu_custom_call.1} parent=11 // pred_region
          _
        $region40: #{tpu_custom_call.1} parent=11 // pred_fallthru
          _
        // Predicated region
        $region41: #{tpu_custom_call.1} parent=11 // pred_check
          %p729 = pneg %p339
        $region42: #{tpu_custom_call.1} parent=11 // pred_check_branch
          %731 = sbr.rel (%p729) target = $region44
        $region43: #{tpu_custom_call.1} parent=11 // pred_region
          %733 = vsyncadd [#allocation12], 0
          %s735 = sshll.u32 %s11, 4
          %s736 = int_to_ptr.hbm [resolvable:$true] %s735
          %s737 = sshll.u32 [#allocation13], 4
          %s738 = int_to_ptr.vmem [resolvable:$true] %s737
          %740 = dma.hbm_to_vmem [thread:$0]  %s736, 16, %s738, [#allocation12]
        $region44: #{tpu_custom_call.1} parent=11 // pred_fallthru
          _
        // Predicated region
        $region45: #{tpu_custom_call.1} parent=11 // pred_check
          %p741 = pneg %p360
        $region46: #{tpu_custom_call.1} parent=11 // pred_check_branch
          %743 = sbr.rel (%p741) target = $region48
        $region47: #{tpu_custom_call.1} parent=11 // pred_region
          _
        $region48: #{tpu_custom_call.1} parent=11 // pred_fallthru
          _
        // Predicated region
        $region49: #{tpu_custom_call.1} parent=11 // pred_check
          %p744 = pneg %p381
        $region50: #{tpu_custom_call.1} parent=11 // pred_check_branch
          %746 = sbr.rel (%p744) target = $region52
        $region51: #{tpu_custom_call.1} parent=11 // pred_region
          %748 = vsyncadd [#allocation15], 0
          %s750 = sshll.u32 %s13, 4
          %s751 = int_to_ptr.hbm [resolvable:$true] %s750
          %s752 = sshll.u32 [#allocation14], 4
          %s753 = int_to_ptr.vmem [resolvable:$true] %s752
          %755 = dma.hbm_to_vmem [thread:$0]  %s751, 16, %s753, [#allocation15]
        $region52: #{tpu_custom_call.1} parent=11 // pred_fallthru
          _
        // Predicated region
        $region53: #{tpu_custom_call.1} parent=11 // pred_check
          %p756 = pneg %p402
        $region54: #{tpu_custom_call.1} parent=11 // pred_check_branch
          %758 = sbr.rel (%p756) target = $region56
        $region55: #{tpu_custom_call.1} parent=11 // pred_region
          _
        $region56: #{tpu_custom_call.1} parent=11 // pred_fallthru
          _
        // Predicated region
        $region57: #{tpu_custom_call.1} parent=11 // pred_check
          %p759 = pneg %p423
        $region58: #{tpu_custom_call.1} parent=11 // pred_check_branch
          %761 = sbr.rel (%p759) target = $region60
        $region59: #{tpu_custom_call.1} parent=11 // pred_region
          %763 = vsyncadd [#allocation15], 0
          %s765 = sshll.u32 %s15, 4
          %s766 = int_to_ptr.hbm [resolvable:$true] %s765
          %s767 = sshll.u32 [#allocation16], 4
          %s768 = int_to_ptr.vmem [resolvable:$true] %s767
          %770 = dma.hbm_to_vmem [thread:$0]  %s766, 16, %s768, [#allocation15]
        $region60: #{tpu_custom_call.1} parent=11 // pred_fallthru
          _
        // Predicated region
        $region61: #{tpu_custom_call.1} parent=11 // pred_check
          %p771 = pneg %p444
        $region62: #{tpu_custom_call.1} parent=11 // pred_check_branch
          %773 = sbr.rel (%p771) target = $region64
        $region63: #{tpu_custom_call.1} parent=11 // pred_region
          _
        $region64: #{tpu_custom_call.1} parent=11 // pred_fallthru
          _
        // Predicated region
        $region65: #{tpu_custom_call.1} parent=11 // pred_check
          %p774 = pneg %p465
        $region66: #{tpu_custom_call.1} parent=11 // pred_check_branch
          %776 = sbr.rel (%p774) target = $region68
        $region67: #{tpu_custom_call.1} parent=11 // pred_region
          %778 = vsyncadd [#allocation18], 0
          %s780 = sshll.u32 %s17, 4
          %s781 = int_to_ptr.hbm [resolvable:$true] %s780
          %s782 = sshll.u32 [#allocation17], 4
          %s783 = int_to_ptr.vmem [resolvable:$true] %s782
          %785 = dma.hbm_to_vmem [thread:$0]  %s781, 16, %s783, [#allocation18]
        $region68: #{tpu_custom_call.1} parent=11 // pred_fallthru
          _
        // Predicated region
        $region69: #{tpu_custom_call.1} parent=11 // pred_check
          %p786 = pneg %p486
        $region70: #{tpu_custom_call.1} parent=11 // pred_check_branch
          %788 = sbr.rel (%p786) target = $region72
        $region71: #{tpu_custom_call.1} parent=11 // pred_region
          _
        $region72: #{tpu_custom_call.1} parent=11 // pred_fallthru
          _
        // Predicated region
        $region73: #{tpu_custom_call.1} parent=11 // pred_check
          %p789 = pneg %p507
        $region74: #{tpu_custom_call.1} parent=11 // pred_check_branch
          %791 = sbr.rel (%p789) target = $region76
        $region75: #{tpu_custom_call.1} parent=11 // pred_region
          _
        $region76: #{tpu_custom_call.1} parent=11 // pred_fallthru
          _
        // Predicated region
        $region77: #{tpu_custom_call.1} parent=11 // pred_check
          %p792 = pneg %p528
        $region78: #{tpu_custom_call.1} parent=11 // pred_check_branch
          %794 = sbr.rel (%p792) target = $region80
        $region79: #{tpu_custom_call.1} parent=11 // pred_region
          _
        $region80: #{tpu_custom_call.1} parent=11 // pred_fallthru
          _
        // Predicated region
        $region81: #{tpu_custom_call.1} parent=11 // pred_check
          %p795 = pneg %p549
        $region82: #{tpu_custom_call.1} parent=11 // pred_check_branch
          %797 = sbr.rel (%p795) target = $region84
        $region83: #{tpu_custom_call.1} parent=11 // pred_region
          _
        $region84: #{tpu_custom_call.1} parent=11 // pred_fallthru
          _
        // Predicated region
        $region85: #{tpu_custom_call.1} parent=11 // pred_check
          %p798 = pneg %p570
        $region86: #{tpu_custom_call.1} parent=11 // pred_check_branch
          %800 = sbr.rel (%p798) target = $region88
        $region87: #{tpu_custom_call.1} parent=11 // pred_region
          _
        $region88: #{tpu_custom_call.1} parent=11 // pred_fallthru
          _
        // Predicated region
        $region89: #{tpu_custom_call.1} parent=11 // pred_check
          %p801 = pneg %p591
        $region90: #{tpu_custom_call.1} parent=11 // pred_check_branch
          %803 = sbr.rel (%p801) target = $region92
        $region91: #{tpu_custom_call.1} parent=11 // pred_region
          _
        $region92: #{tpu_custom_call.1} parent=11 // pred_fallthru
          _
        // Predicated region
        $region93: #{tpu_custom_call.1} parent=11 // pred_check
          %p804 = pneg %p612
        $region94: #{tpu_custom_call.1} parent=11 // pred_check_branch
          %806 = sbr.rel (%p804) target = $region96
        $region95: #{tpu_custom_call.1} parent=11 // pred_region
          _
        $region96: #{tpu_custom_call.1} parent=11 // pred_fallthru
          _
        // Predicated region
        $region97: #{tpu_custom_call.1} parent=11 // pred_check
          %p807 = pneg %p633
        $region98: #{tpu_custom_call.1} parent=11 // pred_check_branch
          %809 = sbr.rel (%p807) target = $region100
        $region99: #{tpu_custom_call.1} parent=11 // pred_region
          _
        $region100: #{tpu_custom_call.1} parent=11 // pred_fallthru
          _
      $region12: #{tpu_custom_call.1} parent=5 // pred_fallthru
        _
      %p810 = scmp.lt.s32.totalorder %s45, 4
      // Predicated region
      $region101: #{tpu_custom_call.1} parent=5 // pred_check
        %p811 = pneg %p810
      $region102: #{tpu_custom_call.1} parent=5 // pred_check_branch
        %813 = sbr.rel (%p811) target = $region104
      $region103: #{tpu_custom_call.1} parent=5 // pred_region
        // Predicated region
        $region105: #{tpu_custom_call.1} parent=103 // pred_check
          %p814 = pneg %p77
        $region106: #{tpu_custom_call.1} parent=103 // pred_check_branch
          %816 = sbr.rel (%p814) target = $region108
        $region107: #{tpu_custom_call.1} parent=103 // pred_region
          %p817 = scmp.lt.s32.totalorder %s53, 1
          %s818 = scalar_select %p817, %s53, 1
          %s819 = smul.addr %s818, 8
          %s820 = scalar_lea.vmem %s0, %s819
        $region108: #{tpu_custom_call.1} parent=103 // pred_fallthru
          _
        // Predicated region
        $region109: #{tpu_custom_call.1} parent=103 // pred_check
          %p821 = pneg %p109
        $region110: #{tpu_custom_call.1} parent=103 // pred_check_branch
          %823 = sbr.rel (%p821) target = $region112
        $region111: #{tpu_custom_call.1} parent=103 // pred_region
          %s824 = ssub.s32 1, %s52
          %s825 = smul.u32 %s824, %s53
          %s826 = sadd.s32 %s825, %s52
          %s827 = smul.u32 16, %s826
          %p828 = scmp.lt.s32.totalorder %s827, 31
          %s829 = scalar_select %p828, %s827, 31
          %s830 = smul.addr %s829, 4
          %s831 = scalar_lea.vmem %s1, %s830
          %s832 = ssub.s32 1, %s52
          %s833 = smul.u32 %s832, %s53
          %s834 = sadd.s32 %s833, %s52
          %s835 = smul.u32 16, %s834
        $region112: #{tpu_custom_call.1} parent=103 // pred_fallthru
          _
        // Predicated region
        $region113: #{tpu_custom_call.1} parent=103 // pred_check
          %p836 = pneg %p137
        $region114: #{tpu_custom_call.1} parent=103 // pred_check_branch
          %838 = sbr.rel (%p836) target = $region116
        $region115: #{tpu_custom_call.1} parent=103 // pred_region
          %s839 = sand.u32 %s127, 1
          %s840 = scalar_lea.sflag [#allocation6], %s839
          %s841 = sand.u32 %s127, 1
          %s842 = smul.addr %s841, 64
          %s843 = scalar_lea.vmem [#allocation5], %s842
          %s844 = smul.u32 %s52, %s53
          %846 = vsyncadd %s840, 0
          %s847 = smul.addr %s844, 4
          %s848 = scalar_lea.hbm %s2, %s847
          %s849 = sshll.u32 %s848, 4
          %s850 = int_to_ptr.hbm [resolvable:$true] %s849
          %s851 = sshll.u32 %s843, 4
          %s852 = int_to_ptr.vmem [resolvable:$true] %s851
          %857 = dma.hbm_to_vmem [thread:$0]  %s850, 1024, %s852, %s840, 128, 64, 4
        $region116: #{tpu_custom_call.1} parent=103 // pred_fallthru
          _
        // Predicated region
        $region117: #{tpu_custom_call.1} parent=103 // pred_check
          %p858 = pneg %p165
        $region118: #{tpu_custom_call.1} parent=103 // pred_check_branch
          %860 = sbr.rel (%p858) target = $region120
        $region119: #{tpu_custom_call.1} parent=103 // pred_region
          %s861 = sand.u32 %s45, 1
          %s862 = scalar_lea.sflag [#allocation9], %s861
          %s863 = sand.u32 %s155, 1
          %s864 = scalar_lea.vmem [#allocation8], %s863
          %s865 = smul.u32 %s52, %s53
          %867 = vsyncadd %s862, 0
          %s868 = scalar_lea.hbm %s3, %s865
          %s870 = sshll.u32 %s868, 4
          %s871 = int_to_ptr.hbm [resolvable:$true] %s870
          %s872 = sshll.u32 %s864, 4
          %s873 = int_to_ptr.vmem [resolvable:$true] %s872
          %875 = dma.hbm_to_vmem [thread:$0]  %s871, 16, %s873, %s862
        $region120: #{tpu_custom_call.1} parent=103 // pred_fallthru
          _
      $region104: #{tpu_custom_call.1} parent=5 // pred_fallthru
        _
      %p876 = scmp.le.s32.totalorder 1, %s45
      %p877 = scmp.lt.s32.totalorder %s45, 5
      %p878 = pnand %p876, %p877
      %p879 = pneg %p878
      // Predicated region
      $region121: #{tpu_custom_call.1} parent=5 // pred_check
        _
      $region122: #{tpu_custom_call.1} parent=5 // pred_check_branch
        %881 = sbr.rel (%p878) target = $region124
      $region123: #{tpu_custom_call.1} parent=5 // pred_region
        %s882 = ssub.s32 %s45, 1
        %s883 = sand.u32 %s130, 1
        %s884 = scalar_lea.sflag [#allocation6], %s883
        %s885 = sand.u32 %s130, 1
        %s886 = smul.addr %s885, 64
        %s887 = scalar_lea.vmem [#allocation5], %s886
        // Predicated region
        $region125: #{tpu_custom_call.1} parent=123 // pred_check
          %p888 = pneg %p143
        $region126: #{tpu_custom_call.1} parent=123 // pred_check_branch
          %890 = sbr.rel (%p888) target = $region128
        $region127: #{tpu_custom_call.1} parent=123 // pred_region
          %892 = dma.done %s884, 1024
        $region128: #{tpu_custom_call.1} parent=123 // pred_fallthru
          _
        %s893 = sand.u32 %s50, 1
        %s894 = scalar_lea.sflag [#allocation9], %s893
        %s895 = sand.u32 %s158, 1
        %s896 = scalar_lea.vmem [#allocation8], %s895
        // Predicated region
        $region129: #{tpu_custom_call.1} parent=123 // pred_check
          %p897 = pneg %p171
        $region130: #{tpu_custom_call.1} parent=123 // pred_check_branch
          %899 = sbr.rel (%p897) target = $region132
        $region131: #{tpu_custom_call.1} parent=123 // pred_region
          %901 = dma.done %s894, 16
        $region132: #{tpu_custom_call.1} parent=123 // pred_fallthru
          _
        // Predicated region
        $region133: #{tpu_custom_call.1} parent=123 // pred_check
          %p902 = pneg %p255
        $region134: #{tpu_custom_call.1} parent=123 // pred_check_branch
          %904 = sbr.rel (%p902) target = $region136
        $region135: #{tpu_custom_call.1} parent=123 // pred_region
          %906 = dma.done [#allocation9], 16
        $region136: #{tpu_custom_call.1} parent=123 // pred_fallthru
          _
        // Predicated region
        $region137: #{tpu_custom_call.1} parent=123 // pred_check
          %p907 = pneg %p297
        $region138: #{tpu_custom_call.1} parent=123 // pred_check_branch
          %909 = sbr.rel (%p907) target = $region140
        $region139: #{tpu_custom_call.1} parent=123 // pred_region
          %911 = dma.done [#allocation12], 16
        $region140: #{tpu_custom_call.1} parent=123 // pred_fallthru
          _
        // Predicated region
        $region141: #{tpu_custom_call.1} parent=123 // pred_check
          %p912 = pneg %p339
        $region142: #{tpu_custom_call.1} parent=123 // pred_check_branch
          %914 = sbr.rel (%p912) target = $region144
        $region143: #{tpu_custom_call.1} parent=123 // pred_region
          %916 = dma.done [#allocation12], 16
        $region144: #{tpu_custom_call.1} parent=123 // pred_fallthru
          _
        // Predicated region
        $region145: #{tpu_custom_call.1} parent=123 // pred_check
          %p917 = pneg %p381
        $region146: #{tpu_custom_call.1} parent=123 // pred_check_branch
          %919 = sbr.rel (%p917) target = $region148
        $region147: #{tpu_custom_call.1} parent=123 // pred_region
          %921 = dma.done [#allocation15], 16
        $region148: #{tpu_custom_call.1} parent=123 // pred_fallthru
          _
        // Predicated region
        $region149: #{tpu_custom_call.1} parent=123 // pred_check
          %p922 = pneg %p423
        $region150: #{tpu_custom_call.1} parent=123 // pred_check_branch
          %924 = sbr.rel (%p922) target = $region152
        $region151: #{tpu_custom_call.1} parent=123 // pred_region
          %926 = dma.done [#allocation15], 16
        $region152: #{tpu_custom_call.1} parent=123 // pred_fallthru
          _
        // Predicated region
        $region153: #{tpu_custom_call.1} parent=123 // pred_check
          %p927 = pneg %p465
        $region154: #{tpu_custom_call.1} parent=123 // pred_check_branch
          %929 = sbr.rel (%p927) target = $region156
        $region155: #{tpu_custom_call.1} parent=123 // pred_region
          %931 = dma.done [#allocation18], 16
        $region156: #{tpu_custom_call.1} parent=123 // pred_fallthru
          _
        %p932 = scmp.lt.s32.totalorder %s55, 1
        %s933 = scalar_select %p932, %s55, 1
        %s934 = smul.addr %s933, 8
        %s935 = scalar_lea.vmem %s0, %s934
        %p936 = pneg %p83
        %p937 = pneg %p80
        %s938 = ssub.s32 1, %s54
        %s939 = smul.u32 %s938, %s55
        %s940 = sadd.s32 %s939, %s54
        %s941 = smul.u32 16, %s940
        %p942 = scmp.lt.s32.totalorder %s941, 31
        %s943 = scalar_select %p942, %s941, 31
        %s944 = smul.addr %s943, 4
        %s945 = scalar_lea.vmem %s1, %s944
        %p946 = pneg %p115
        %p947 = pneg %p112
        %s948 = sand.u32 %s130, 1
        %s949 = scalar_lea.sflag [#allocation6], %s948
        %s950 = sand.u32 %s130, 1
        %s951 = smul.addr %s950, 64
        %s952 = scalar_lea.vmem [#allocation5], %s951
        %p953 = pneg %p143
        %p954 = pneg %p140
        %s955 = sand.u32 %s50, 1
        %s956 = scalar_lea.sflag [#allocation9], %s955
        %s957 = sand.u32 %s158, 1
        %s958 = scalar_lea.vmem [#allocation8], %s957
        %p959 = pneg %p171
        %p960 = pneg %p168
        %p961 = pneg %p192
        %p962 = pneg %p189
        %p963 = pneg %p213
        %p964 = pneg %p210
        %p965 = pneg %p234
        %p966 = pneg %p231
        %p967 = pneg %p255
        %p968 = pneg %p252
        %p969 = pneg %p276
        %p970 = pneg %p273
        %p971 = pneg %p297
        %p972 = pneg %p294
        %p973 = pneg %p318
        %p974 = pneg %p315
        %p975 = pneg %p339
        %p976 = pneg %p336
        %p977 = pneg %p360
        %p978 = pneg %p357
        %p979 = pneg %p381
        %p980 = pneg %p378
        %p981 = pneg %p402
        %p982 = pneg %p399
        %p983 = pneg %p423
        %p984 = pneg %p420
        %p985 = pneg %p444
        %p986 = pneg %p441
        %p987 = pneg %p465
        %p988 = pneg %p462
        %p989 = pneg %p486
        %p990 = pneg %p483
        %p991 = pneg %p507
        %p992 = pneg %p504
        %p993 = pneg %p528
        %p994 = pneg %p525
        %p995 = pneg %p549
        %p996 = pneg %p546
        %p997 = pneg %p570
        %p998 = pneg %p567
        %p999 = pneg %p591
        %p1000 = pneg %p588
        %p1001 = pneg %p612
        %p1002 = pneg %p609
        %p1003 = pneg %p633
        %p1004 = pneg %p630
        %p1005 = pneg %p654
        %p1006 = pneg %p651
        %p1007 = pneg %p675
        %p1008 = pneg %p672
        %p1009 = scmp.lt.s32.totalorder %s55, 1
        %s1010 = scalar_select %p1009, %s55, 1
        %s1011 = smul.addr %s1010, 8
        %s1012 = scalar_lea.vmem %s0, %s1011
        %s1013 = ssub.s32 1, %s54
        %s1014 = smul.u32 %s1013, %s55
        %s1015 = sadd.s32 %s1014, %s54
        %s1016 = smul.u32 16, %s1015
        %p1017 = scmp.lt.s32.totalorder %s1016, 31
        %s1018 = scalar_select %p1017, %s1016, 31
        %s1019 = smul.addr %s1018, 4
        %s1020 = scalar_lea.vmem %s1, %s1019
        %s1021 = ssub.s32 1, %s54
        %s1022 = smul.u32 %s1021, %s55
        %s1023 = sadd.s32 %s1022, %s54
        %s1024 = smul.u32 16, %s1023
        %s1025 = smul.u32 %s54, %s55
        %s1026 = smul.u32 %s54, %s55
        %p1028 = scmp.eq.s32.totalorder %s54, 0
        // Predicated region
        $region157: #{tpu_custom_call.1} parent=123 // pred_check
          %p1029 = pneg %p1028
        $region158: #{tpu_custom_call.1} parent=123 // pred_check_branch
          %1031 = sbr.rel (%p1029) target = $region160
        $region159: #{tpu_custom_call.1} parent=123 // pred_region
          %p1032 = scmp.eq.s32.totalorder %s55, 0
          // Predicated region
          $region161: #{tpu_custom_call.1} parent=159 // pred_check
            %p1033 = pneg %p1032
          $region162: #{tpu_custom_call.1} parent=159 // pred_check_branch
            %1035 = sbr.rel (%p1033) target = $region164
          $region163: #{tpu_custom_call.1} parent=159 // pred_region
            %1036 = vst [vmem:[#allocation2] sm:$0xff] 0.0
          $region164: #{tpu_custom_call.1} parent=159 // pred_fallthru
            _
          %v1037 = vld [vmem:[#allocation2] sm:$0xff]
          %v1038 = vld [vmem:[%s1012] sm:$0xff]
          %v1039 = vpack.c.bf16 %v1038, %v1038
          %v1040 = vld [vmem:[%s1020] sm:$0xf]
          %v1041 = vld [vmem:[%s1020 + $0x4] sm:$0xf]
          %v1042 = vld [vmem:[%s1020 + $0x8] sm:$0xf]
          %v1043 = vld [vmem:[%s1020 + $0xc] sm:$0xf]
          %v1044 = vld [vmem:[%s1020 + $0x10] sm:$0xf]
          %v1045 = vld [vmem:[%s1020 + $0x14] sm:$0xf]
          %v1046 = vld [vmem:[%s1020 + $0x18] sm:$0xf]
          %v1047 = vld [vmem:[%s1020 + $0x1c] sm:$0xf]
          %v1048 = vld [vmem:[%s1020 + $0x20] sm:$0xf]
          %v1049 = vld [vmem:[%s1020 + $0x24] sm:$0xf]
          %v1050 = vld [vmem:[%s1020 + $0x28] sm:$0xf]
          %v1051 = vld [vmem:[%s1020 + $0x2c] sm:$0xf]
          %v1052 = vld [vmem:[%s1020 + $0x30] sm:$0xf]
          %v1053 = vld [vmem:[%s1020 + $0x34] sm:$0xf]
          %v1054 = vld [vmem:[%s1020 + $0x38] sm:$0xf]
          %v1055 = vld [vmem:[%s1020 + $0x3c] sm:$0xf]
          %v1072 = vunpack.c.l.b16 %v1040
          %v1073 = vunpack.c.l.b16 %v1041
          %v1074 = vunpack.c.l.b16 %v1042
          %v1075 = vunpack.c.l.b16 %v1043
          %v1076 = vunpack.c.l.b16 %v1044
          %v1077 = vunpack.c.l.b16 %v1045
          %v1078 = vunpack.c.l.b16 %v1046
          %v1079 = vunpack.c.l.b16 %v1047
          %v1080 = vunpack.c.l.b16 %v1048
          %v1081 = vunpack.c.l.b16 %v1049
          %v1082 = vunpack.c.l.b16 %v1050
          %v1083 = vunpack.c.l.b16 %v1051
          %v1084 = vunpack.c.l.b16 %v1052
          %v1085 = vunpack.c.l.b16 %v1053
          %v1086 = vunpack.c.l.b16 %v1054
          %v1087 = vunpack.c.l.b16 %v1055
          %v1088 = vpack.c.b16 %v1073, %v1072
          %v1089 = vpack.c.b16 %v1075, %v1074
          %v1090 = vpack.c.b16 %v1077, %v1076
          %v1091 = vpack.c.b16 %v1079, %v1078
          %v1092 = vpack.c.b16 %v1081, %v1080
          %v1093 = vpack.c.b16 %v1083, %v1082
          %v1094 = vpack.c.b16 %v1085, %v1084
          %v1095 = vpack.c.b16 %v1087, %v1086
          %1104 = vmatpush.bf16.msra.mxu0 %v1095
          %1105 = vmatpush.bf16.msra.mxu0 %v1094
          %1106 = vmatpush.bf16.msra.mxu0 %v1093
          %1107 = vmatpush.bf16.msra.mxu0 %v1092
          %1108 = vmatpush.bf16.msra.mxu0 %v1091
          %1109 = vmatpush.bf16.msra.mxu0 %v1090
          %1110 = vmatpush.bf16.msra.mxu0 %v1089
          %1111 = vmatpush.bf16.msra.mxu0 %v1088
          %1112 = vmatmul.bf16.gmra.mxu0 %v1039
          %v1113 = vpop.f32.mrf.mxu0
          %v1114 = vadd.f32 0.0, %v1113
          %v1115 = vpop.f32.mrf.mxu0
          %1116 = vdwg.mxu0
          %v1117 = vadd.f32 %v1037, %v1114
          %1118 = vst [vmem:[#allocation2] sm:$0xff] %v1117
        $region160: #{tpu_custom_call.1} parent=123 // pred_fallthru
          _
        %p1119 = scmp.eq.s32.totalorder %s54, 1
        %p1120 = scmp.eq.s32.totalorder %s55, 0
        %p1121 = pnand %p1119, %p1120
        %p1122 = pneg %p1121
        // Predicated region
        $region165: #{tpu_custom_call.1} parent=123 // pred_check
          _
        $region166: #{tpu_custom_call.1} parent=123 // pred_check_branch
          %1124 = sbr.rel (%p1121) target = $region168
        $region167: #{tpu_custom_call.1} parent=123 // pred_region
          %v1125 = vld [vmem:[%s4] sm:$0xff]
          %v1126 = vld [vmem:[#allocation2] sm:$0xff]
          %v1127 = vld [vmem:[#allocation10] sm:$0x1]
          %v1129 = vperm.slane %v1127, 0
          %v1131 = vadd.f32 %v1126, %v1129
          %v1132 = vmax.f32 %v1131, 0.0
          %v1133 = vld [vmem:[%s8] sm:$0xf]
          %v1134 = vld [vmem:[%s8 + $0x4] sm:$0xf]
          %v1135 = vld [vmem:[%s8 + $0x8] sm:$0xf]
          %v1136 = vld [vmem:[%s8 + $0xc] sm:$0xf]
          %v1137 = vld [vmem:[%s8 + $0x10] sm:$0xf]
          %v1138 = vld [vmem:[%s8 + $0x14] sm:$0xf]
          %v1139 = vld [vmem:[%s8 + $0x18] sm:$0xf]
          %v1140 = vld [vmem:[%s8 + $0x1c] sm:$0xf]
          %v1141 = vld [vmem:[%s8 + $0x20] sm:$0xf]
          %v1142 = vld [vmem:[%s8 + $0x24] sm:$0xf]
          %v1143 = vld [vmem:[%s8 + $0x28] sm:$0xf]
          %v1144 = vld [vmem:[%s8 + $0x2c] sm:$0xf]
          %v1145 = vld [vmem:[%s8 + $0x30] sm:$0xf]
          %v1146 = vld [vmem:[%s8 + $0x34] sm:$0xf]
          %v1147 = vld [vmem:[%s8 + $0x38] sm:$0xf]
          %v1148 = vld [vmem:[%s8 + $0x3c] sm:$0xf]
          %v1149 = vpack.c.bf16 %v1132, %v1132
          %v1150 = vld [vmem:[#allocation11] sm:$0x1]
          %v1152 = vperm.slane %v1150, 0
          %v1170 = vunpack.c.l.b16 %v1133
          %v1171 = vunpack.c.l.b16 %v1134
          %v1172 = vunpack.c.l.b16 %v1135
          %v1173 = vunpack.c.l.b16 %v1136
          %v1174 = vunpack.c.l.b16 %v1137
          %v1175 = vunpack.c.l.b16 %v1138
          %v1176 = vunpack.c.l.b16 %v1139
          %v1177 = vunpack.c.l.b16 %v1140
          %v1178 = vunpack.c.l.b16 %v1141
          %v1179 = vunpack.c.l.b16 %v1142
          %v1180 = vunpack.c.l.b16 %v1143
          %v1181 = vunpack.c.l.b16 %v1144
          %v1182 = vunpack.c.l.b16 %v1145
          %v1183 = vunpack.c.l.b16 %v1146
          %v1184 = vunpack.c.l.b16 %v1147
          %v1185 = vunpack.c.l.b16 %v1148
          %v1186 = vpack.c.b16 %v1171, %v1170
          %v1187 = vpack.c.b16 %v1173, %v1172
          %v1188 = vpack.c.b16 %v1175, %v1174
          %v1189 = vpack.c.b16 %v1177, %v1176
          %v1190 = vpack.c.b16 %v1179, %v1178
          %v1191 = vpack.c.b16 %v1181, %v1180
          %v1192 = vpack.c.b16 %v1183, %v1182
          %v1193 = vpack.c.b16 %v1185, %v1184
          %1202 = vmatpush.bf16.msra.mxu0 %v1193
          %1203 = vmatpush.bf16.msra.mxu0 %v1192
          %1204 = vmatpush.bf16.msra.mxu0 %v1191
          %1205 = vmatpush.bf16.msra.mxu0 %v1190
          %1206 = vmatpush.bf16.msra.mxu0 %v1189
          %1207 = vmatpush.bf16.msra.mxu0 %v1188
          %1208 = vmatpush.bf16.msra.mxu0 %v1187
          %1209 = vmatpush.bf16.msra.mxu0 %v1186
          %1210 = vmatmul.bf16.gmra.mxu0 %v1149
          %v1211 = vpop.f32.mrf.mxu0
          %v1212 = vadd.f32 %v1152, %v1211
          %v1213 = vpop.f32.mrf.mxu0
          %1214 = vdwg.mxu0
          %v1215 = vld [vmem:[%s10] sm:$0xf]
          %v1216 = vld [vmem:[%s10 + $0x4] sm:$0xf]
          %v1217 = vld [vmem:[%s10 + $0x8] sm:$0xf]
          %v1218 = vld [vmem:[%s10 + $0xc] sm:$0xf]
          %v1219 = vld [vmem:[%s10 + $0x10] sm:$0xf]
          %v1220 = vld [vmem:[%s10 + $0x14] sm:$0xf]
          %v1221 = vld [vmem:[%s10 + $0x18] sm:$0xf]
          %v1222 = vld [vmem:[%s10 + $0x1c] sm:$0xf]
          %v1223 = vld [vmem:[%s10 + $0x20] sm:$0xf]
          %v1224 = vld [vmem:[%s10 + $0x24] sm:$0xf]
          %v1225 = vld [vmem:[%s10 + $0x28] sm:$0xf]
          %v1226 = vld [vmem:[%s10 + $0x2c] sm:$0xf]
          %v1227 = vld [vmem:[%s10 + $0x30] sm:$0xf]
          %v1228 = vld [vmem:[%s10 + $0x34] sm:$0xf]
          %v1229 = vld [vmem:[%s10 + $0x38] sm:$0xf]
          %v1230 = vld [vmem:[%s10 + $0x3c] sm:$0xf]
          %v1231 = vld [vmem:[#allocation13] sm:$0x1]
          %v1233 = vperm.slane %v1231, 0
          %v1251 = vunpack.c.l.b16 %v1215
          %v1252 = vunpack.c.l.b16 %v1216
          %v1253 = vunpack.c.l.b16 %v1217
          %v1254 = vunpack.c.l.b16 %v1218
          %v1255 = vunpack.c.l.b16 %v1219
          %v1256 = vunpack.c.l.b16 %v1220
          %v1257 = vunpack.c.l.b16 %v1221
          %v1258 = vunpack.c.l.b16 %v1222
          %v1259 = vunpack.c.l.b16 %v1223
          %v1260 = vunpack.c.l.b16 %v1224
          %v1261 = vunpack.c.l.b16 %v1225
          %v1262 = vunpack.c.l.b16 %v1226
          %v1263 = vunpack.c.l.b16 %v1227
          %v1264 = vunpack.c.l.b16 %v1228
          %v1265 = vunpack.c.l.b16 %v1229
          %v1266 = vunpack.c.l.b16 %v1230
          %v1267 = vpack.c.b16 %v1252, %v1251
          %v1268 = vpack.c.b16 %v1254, %v1253
          %v1269 = vpack.c.b16 %v1256, %v1255
          %v1270 = vpack.c.b16 %v1258, %v1257
          %v1271 = vpack.c.b16 %v1260, %v1259
          %v1272 = vpack.c.b16 %v1262, %v1261
          %v1273 = vpack.c.b16 %v1264, %v1263
          %v1274 = vpack.c.b16 %v1266, %v1265
          %1283 = vmatpush.bf16.msra.mxu0 %v1274
          %1284 = vmatpush.bf16.msra.mxu0 %v1273
          %1285 = vmatpush.bf16.msra.mxu0 %v1272
          %1286 = vmatpush.bf16.msra.mxu0 %v1271
          %1287 = vmatpush.bf16.msra.mxu0 %v1270
          %1288 = vmatpush.bf16.msra.mxu0 %v1269
          %1289 = vmatpush.bf16.msra.mxu0 %v1268
          %1290 = vmatpush.bf16.msra.mxu0 %v1267
          %1291 = vmatmul.bf16.gmra.mxu0 %v1149
          %v1292 = vpop.f32.mrf.mxu0
          %v1293 = vadd.f32 %v1233, %v1292
          %v1294 = vpop.f32.mrf.mxu0
          %1295 = vdwg.mxu0
          %v1296 = vld [vmem:[%s12] sm:$0xf]
          %v1297 = vld [vmem:[%s12 + $0x4] sm:$0xf]
          %v1298 = vld [vmem:[%s12 + $0x8] sm:$0xf]
          %v1299 = vld [vmem:[%s12 + $0xc] sm:$0xf]
          %v1300 = vld [vmem:[%s12 + $0x10] sm:$0xf]
          %v1301 = vld [vmem:[%s12 + $0x14] sm:$0xf]
          %v1302 = vld [vmem:[%s12 + $0x18] sm:$0xf]
          %v1303 = vld [vmem:[%s12 + $0x1c] sm:$0xf]
          %v1304 = vpack.c.bf16 %v1125, %v1125
          %v1305 = vld [vmem:[#allocation14] sm:$0x1]
          %v1307 = vperm.slane %v1305, 0
          %v1317 = vunpack.c.l.b16 %v1296
          %v1318 = vunpack.c.l.b16 %v1297
          %v1319 = vunpack.c.l.b16 %v1298
          %v1320 = vunpack.c.l.b16 %v1299
          %v1321 = vunpack.c.l.b16 %v1300
          %v1322 = vunpack.c.l.b16 %v1301
          %v1323 = vunpack.c.l.b16 %v1302
          %v1324 = vunpack.c.l.b16 %v1303
          %v1325 = vpack.c.b16 %v1318, %v1317
          %v1326 = vpack.c.b16 %v1320, %v1319
          %v1327 = vpack.c.b16 %v1322, %v1321
          %v1328 = vpack.c.b16 %v1324, %v1323
          %vm1333 = vcmask 523264
          %v1335 = vsel %vm1333, %v1304, 0
          %1337 = vmatpush.bf16.msra.mxu0 0
          %1338 = vmatpush.bf16.msra.mxu0 0
          %1339 = vmatpush.bf16.msra.mxu0 0
          %1340 = vmatpush.bf16.msra.mxu0 0
          %1341 = vmatpush.bf16.msra.mxu0 %v1328
          %1342 = vmatpush.bf16.msra.mxu0 %v1327
          %1343 = vmatpush.bf16.msra.mxu0 %v1326
          %1344 = vmatpush.bf16.msra.mxu0 %v1325
          %1345 = vmatmul.bf16.gmra.mxu0 %v1335
          %v1346 = vpop.f32.mrf.mxu0
          %v1347 = vadd.f32 %v1307, %v1346
          %v1348 = vpop.f32.mrf.mxu0
          %1349 = vdwg.mxu0
          %v1350 = vmax.f32 %v1347, 0.0
          %v1351 = vld [vmem:[%s14] sm:$0xf]
          %v1352 = vld [vmem:[%s14 + $0x4] sm:$0xf]
          %v1353 = vld [vmem:[%s14 + $0x8] sm:$0xf]
          %v1354 = vld [vmem:[%s14 + $0xc] sm:$0xf]
          %v1355 = vld [vmem:[%s14 + $0x10] sm:$0xf]
          %v1356 = vld [vmem:[%s14 + $0x14] sm:$0xf]
          %v1357 = vld [vmem:[%s14 + $0x18] sm:$0xf]
          %v1358 = vld [vmem:[%s14 + $0x1c] sm:$0xf]
          %v1359 = vpack.c.bf16 %v1350, %v1350
          %v1360 = vld [vmem:[#allocation16] sm:$0x1]
          %v1362 = vperm.slane %v1360, 0
          %v1372 = vunpack.c.l.b16 %v1351
          %v1373 = vunpack.c.l.b16 %v1352
          %v1374 = vunpack.c.l.b16 %v1353
          %v1375 = vunpack.c.l.b16 %v1354
          %v1376 = vunpack.c.l.b16 %v1355
          %v1377 = vunpack.c.l.b16 %v1356
          %v1378 = vunpack.c.l.b16 %v1357
          %v1379 = vunpack.c.l.b16 %v1358
          %v1380 = vpack.c.b16 %v1373, %v1372
          %v1381 = vpack.c.b16 %v1375, %v1374
          %v1382 = vpack.c.b16 %v1377, %v1376
          %v1383 = vpack.c.b16 %v1379, %v1378
          %v1389 = vsel %vm1333, %v1359, 0
          %1391 = vmatpush.bf16.msra.mxu0 0
          %1392 = vmatpush.bf16.msra.mxu0 0
          %1393 = vmatpush.bf16.msra.mxu0 0
          %1394 = vmatpush.bf16.msra.mxu0 0
          %1395 = vmatpush.bf16.msra.mxu0 %v1383
          %1396 = vmatpush.bf16.msra.mxu0 %v1382
          %1397 = vmatpush.bf16.msra.mxu0 %v1381
          %1398 = vmatpush.bf16.msra.mxu0 %v1380
          %1399 = vmatmul.bf16.gmra.mxu0 %v1389
          %v1400 = vpop.f32.mrf.mxu0
          %v1401 = vadd.f32 %v1362, %v1400
          %v1402 = vpop.f32.mrf.mxu0
          %1403 = vdwg.mxu0
          %v1404 = vld [vmem:[%s16] sm:$0xf]
          %v1405 = vld [vmem:[%s16 + $0x4] sm:$0xf]
          %v1406 = vld [vmem:[%s16 + $0x8] sm:$0xf]
          %v1407 = vld [vmem:[%s16 + $0xc] sm:$0xf]
          %v1408 = vld [vmem:[%s16 + $0x10] sm:$0xf]
          %v1409 = vld [vmem:[%s16 + $0x14] sm:$0xf]
          %v1410 = vld [vmem:[%s16 + $0x18] sm:$0xf]
          %v1411 = vld [vmem:[%s16 + $0x1c] sm:$0xf]
          %v1412 = vld [vmem:[#allocation17] sm:$0x1]
          %v1414 = vperm.slane %v1412, 0
          %v1424 = vunpack.c.l.b16 %v1404
          %v1425 = vunpack.c.l.b16 %v1405
          %v1426 = vunpack.c.l.b16 %v1406
          %v1427 = vunpack.c.l.b16 %v1407
          %v1428 = vunpack.c.l.b16 %v1408
          %v1429 = vunpack.c.l.b16 %v1409
          %v1430 = vunpack.c.l.b16 %v1410
          %v1431 = vunpack.c.l.b16 %v1411
          %v1432 = vpack.c.b16 %v1425, %v1424
          %v1433 = vpack.c.b16 %v1427, %v1426
          %v1434 = vpack.c.b16 %v1429, %v1428
          %v1435 = vpack.c.b16 %v1431, %v1430
          %1440 = vmatpush.bf16.msra.mxu0 0
          %1441 = vmatpush.bf16.msra.mxu0 0
          %1442 = vmatpush.bf16.msra.mxu0 0
          %1443 = vmatpush.bf16.msra.mxu0 0
          %1444 = vmatpush.bf16.msra.mxu0 %v1435
          %1445 = vmatpush.bf16.msra.mxu0 %v1434
          %1446 = vmatpush.bf16.msra.mxu0 %v1433
          %1447 = vmatpush.bf16.msra.mxu0 %v1432
          %1448 = vmatmul.bf16.gmra.mxu0 %v1389
          %v1449 = vpop.f32.mrf.mxu0
          %v1450 = vadd.f32 %v1414, %v1449
          %v1451 = vpop.f32.mrf.mxu0
          %1452 = vdwg.mxu0
          %v1453 = vmul.f32 %v1293, 1.442695
          %v1454 = vpow.pop %v1453
          %v1455 = vld [vmem:[%s5] sm:$0xff]
          %1457 = vset.pattern.permute.xlu0 0
          %1458 = vperm.xlu0 %1457, %v1455
          %v1459 = vpop.permute.xlu0 %1458
          %v1461 = vmul.f32 %v1454, %v1459
          %v1462 = vadd.f32 %v1212, %v1461
          %v1463 = vmul.f32 %v1450, 1.442695
          %v1464 = vpow.pop %v1463
          %v1465 = vld [vmem:[%s6] sm:$0xff]
          %1467 = vset.pattern.permute.xlu0 0
          %1468 = vperm.xlu0 %1467, %v1465
          %v1469 = vpop.permute.xlu0 %1468
          %v1471 = vmul.f32 %v1464, %v1469
          %v1472 = vadd.f32 %v1401, %v1471
          %v1473 = vld [vmem:[%s18] sm:$0xf]
          %v1474 = vld [vmem:[%s18 + $0x4] sm:$0xf]
          %v1475 = vpack.c.bf16 %v1472, %v1462
          %v1476 = vld [vmem:[%s19] sm:$0x1]
          %v1478 = vperm.slane %v1476, 0
          %v1482 = vunpack.c.l.b16 %v1473
          %v1483 = vunpack.c.l.b16 %v1474
          %v1484 = vpack.c.b16 %v1483, %v1482
          %vm1486 = vcmask 130048
          %v1488 = vsel %vm1486, %v1475, 0
          %1490 = vmatpush.bf16.msra.mxu0 0
          %1491 = vmatpush.bf16.msra.mxu0 0
          %1492 = vmatpush.bf16.msra.mxu0 0
          %1493 = vmatpush.bf16.msra.mxu0 0
          %1494 = vmatpush.bf16.msra.mxu0 0
          %1495 = vmatpush.bf16.msra.mxu0 0
          %1496 = vmatpush.bf16.msra.mxu0 0
          %1497 = vmatpush.bf16.msra.mxu0 %v1484
          %1498 = vmatmul.bf16.gmra.mxu0 %v1488
          %v1499 = vpop.f32.mrf.mxu0
          %v1500 = vadd.f32 %v1478, %v1499
          %v1501 = vpop.f32.mrf.mxu0
          %v1502 = vadd.f32 %v1478, %v1501
          %1503 = vdwg.mxu0
          %v1504 = vmax.f32 %v1500, 0.0
          %v1505 = vmax.f32 %v1502, 0.0
          %v1506 = vpack.c.bf16 %v1504, %v1504
          %v1507 = vpack.c.bf16 %v1505, %v1505
          %1508 = vst [vmem:[#allocation3] sm:$0xf] %v1506
          %1509 = vst [vmem:[#allocation3 + $0x4] sm:$0xf] %v1507
          %v1510 = vld [vmem:[%s20] sm:$0xf]
          %v1511 = vld [vmem:[%s20 + $0x4] sm:$0xf]
          %v1512 = vld [vmem:[%s21] sm:$0x1]
          %v1514 = vperm.slane %v1512, 0
          %v1518 = vunpack.c.l.b16 %v1510
          %v1519 = vunpack.c.l.b16 %v1511
          %v1520 = vpack.c.b16 %v1519, %v1518
          %1522 = vmatpush.bf16.msra.mxu0 0
          %1523 = vmatpush.bf16.msra.mxu0 0
          %1524 = vmatpush.bf16.msra.mxu0 0
          %1525 = vmatpush.bf16.msra.mxu0 0
          %1526 = vmatpush.bf16.msra.mxu0 0
          %1527 = vmatpush.bf16.msra.mxu0 0
          %1528 = vmatpush.bf16.msra.mxu0 0
          %1529 = vmatpush.bf16.msra.mxu0 %v1520
          %1530 = vmatmul.bf16.gmra.mxu0 %v1488
          %v1531 = vpop.f32.mrf.mxu0
          %v1532 = vadd.f32 %v1514, %v1531
          %v1533 = vpop.f32.mrf.mxu0
          %v1534 = vadd.f32 %v1514, %v1533
          %1535 = vdwg.mxu0
          %v1536 = vmax.f32 %v1532, 0.0
          %v1537 = vmax.f32 %v1534, 0.0
          %v1538 = vld [vmem:[%s22] sm:$0xf]
          %v1539 = vld [vmem:[%s22 + $0x4] sm:$0xf]
          %v1540 = vld [vmem:[%s22 + $0x8] sm:$0xf]
          %v1541 = vld [vmem:[%s22 + $0xc] sm:$0xf]
          %v1542 = vld [vmem:[%s22 + $0x10] sm:$0xf]
          %v1543 = vld [vmem:[%s22 + $0x14] sm:$0xf]
          %v1544 = vld [vmem:[%s22 + $0x18] sm:$0xf]
          %v1545 = vld [vmem:[%s22 + $0x1c] sm:$0xf]
          %v1546 = vpack.c.bf16 %v1537, %v1536
          %v1547 = vld [vmem:[%s23] sm:$0x1]
          %v1549 = vperm.slane %v1547, 0
          %v1559 = vunpack.c.l.b16 %v1538
          %v1560 = vunpack.c.l.b16 %v1539
          %v1561 = vunpack.c.l.b16 %v1540
          %v1562 = vunpack.c.l.b16 %v1541
          %v1563 = vunpack.c.l.b16 %v1542
          %v1564 = vunpack.c.l.b16 %v1543
          %v1565 = vunpack.c.l.b16 %v1544
          %v1566 = vunpack.c.l.b16 %v1545
          %v1567 = vpack.c.b16 %v1560, %v1559
          %v1568 = vpack.c.b16 %v1562, %v1561
          %v1569 = vpack.c.b16 %v1564, %v1563
          %v1570 = vpack.c.b16 %v1566, %v1565
          %v1576 = vsel %vm1333, %v1546, 0
          %1578 = vmatpush.bf16.msra.mxu0 0
          %1579 = vmatpush.bf16.msra.mxu0 0
          %1580 = vmatpush.bf16.msra.mxu0 0
          %1581 = vmatpush.bf16.msra.mxu0 0
          %1582 = vmatpush.bf16.msra.mxu0 %v1570
          %1583 = vmatpush.bf16.msra.mxu0 %v1569
          %1584 = vmatpush.bf16.msra.mxu0 %v1568
          %1585 = vmatpush.bf16.msra.mxu0 %v1567
          %1586 = vmatmul.bf16.gmra.mxu0 %v1576
          %v1587 = vpop.f32.mrf.mxu0
          %v1588 = vadd.f32 %v1549, %v1587
          %v1589 = vpop.f32.mrf.mxu0
          %v1590 = vadd.f32 %v1549, %v1589
          %1591 = vdwg.mxu0
          %v1592 = vsub.f32 %v1590, %v1125
          %v1593 = vmul.f32 %v1592, %v1592
          %v1594 = vsel %vm1333, %v1593, 0.0
          %1595 = vadd.xlane.f32.xlu0 %v1594
          %v1596 = vpop.xlane.xlu0 %1595
          %v1597 = vrot.slane %v1596, 4
          %v1598 = vadd.f32 %v1596, %v1597
          %v1599 = vrot.slane %v1598, 2
          %v1600 = vadd.f32 %v1598, %v1599
          %v1601 = vrot.slane %v1600, 1
          %v1602 = vadd.f32 %v1600, %v1601
          %s1603 = vtos %v1602
          %v1604 = vsub.f32 %v1588, %v1125
          %v1605 = vmul.f32 %v1604, %v1604
          %v1606 = vsel %vm1333, %v1605, 0.0
          %1607 = vadd.xlane.f32.xlu0 %v1606
          %v1608 = vpop.xlane.xlu0 %1607
          %v1609 = vrot.slane %v1608, 4
          %v1610 = vadd.f32 %v1608, %v1609
          %v1611 = vrot.slane %v1610, 2
          %v1612 = vadd.f32 %v1610, %v1611
          %v1613 = vrot.slane %v1612, 1
          %v1614 = vadd.f32 %v1612, %v1613
          %s1615 = vtos %v1614
          %v1616 = vadd.f32 %v1450, 1.0
          %v1617 = vmul.f32 %v1401, %v1401
          %v1618 = vsub.f32 %v1616, %v1617
          %v1619 = vsub.f32 %v1618, %v1464
          %v1620 = vsel %vm1486, %v1619, 0.0
          %1621 = vadd.xlane.f32.xlu0 %v1620
          %v1622 = vpop.xlane.xlu0 %1621
          %v1623 = vrot.slane %v1622, 4
          %v1624 = vadd.f32 %v1622, %v1623
          %v1625 = vrot.slane %v1624, 2
          %v1626 = vadd.f32 %v1624, %v1625
          %v1627 = vrot.slane %v1626, 1
          %v1628 = vadd.f32 %v1626, %v1627
          %s1629 = vtos %v1628
          %s1630 = smul.f32 %s1629, 0.5
          %v1631 = vadd.f32 %v1293, 1.0
          %v1632 = vmul.f32 %v1212, %v1212
          %v1633 = vsub.f32 %v1631, %v1632
          %v1634 = vsub.f32 %v1633, %v1454
          %v1635 = vsel %vm1486, %v1634, 0.0
          %1636 = vadd.xlane.f32.xlu0 %v1635
          %v1637 = vpop.xlane.xlu0 %1636
          %v1638 = vrot.slane %v1637, 4
          %v1639 = vadd.f32 %v1637, %v1638
          %v1640 = vrot.slane %v1639, 2
          %v1641 = vadd.f32 %v1639, %v1640
          %v1642 = vrot.slane %v1641, 1
          %v1643 = vadd.f32 %v1641, %v1642
          %s1644 = vtos %v1643
          %s1645 = smul.f32 %s1644, 0.5
          %s1646 = sadd.f32 %s1630, %s1645
          %v1647 = vsub.f32 %v1212, %v1401
          %v1648 = vmul.f32 %v1647, %v1647
          %v1649 = vsel %vm1486, %v1648, 0.0
          %1650 = vadd.xlane.f32.xlu0 %v1649
          %v1651 = vpop.xlane.xlu0 %1650
          %v1652 = vmul.f32 %v1293, 0.5
          %v1653 = vmul.f32 %v1652, 1.442695
          %v1654 = vpow.pop %v1653
          %v1655 = vmul.f32 %v1450, 0.5
          %v1656 = vmul.f32 %v1655, 1.442695
          %v1657 = vpow.pop %v1656
          %v1658 = vsub.f32 %v1654, %v1657
          %v1659 = vmul.f32 %v1658, %v1658
          %v1660 = vsel %vm1486, %v1659, 0.0
          %1661 = vadd.xlane.f32.xlu0 %v1660
          %v1662 = vpop.xlane.xlu0 %1661
          %v1663 = vadd.f32 %v1651, %v1662
          %v1664 = vrsqrt.pop %v1663
          %v1665 = vmul.f32 %v1664, %v1663
          %v1666 = vmul.f32 %v1665, %v1664
          %v1667 = vmul.f32 0.5, %v1666
          %v1668 = vsub.f32 1.5, %v1667
          %v1669 = vmul.f32 %v1664, %v1668
          %v1670 = vmul.f32 %v1663, %v1669
          %vm1671 = vcmp.eq.f32.partialorder %v1663, inf
          %v1672 = vsel %vm1671, %v1663, %v1670
          %vm1673 = vcmp.eq.f32.partialorder %v1663, 0.0
          %v1674 = vand.u32 %v1663, 2147483648
          %v1675 = vsel %vm1673, %v1674, %v1672
          %vm1676 = vcmask 7168
          %v1677 = vsel %vm1676, %v1675, 0.0
          %1678 = vadd.xlane.f32.xlu0 %v1677
          %v1679 = vpop.xlane.xlu0 %1678
          %v1680 = vrot.slane %v1679, 4
          %v1681 = vadd.f32 %v1679, %v1680
          %v1682 = vrot.slane %v1681, 2
          %v1683 = vadd.f32 %v1681, %v1682
          %v1684 = vrot.slane %v1683, 1
          %v1685 = vadd.f32 %v1683, %v1684
          %s1686 = vtos %v1685
          %s1687 = scalar_lea.smem [#allocation4], 0
          %1688 = sst [smem:[%s1687]] %s1603
          %s1689 = scalar_lea.smem [#allocation4], 1
          %1690 = sst [smem:[%s1689]] %s1615
          %s1691 = scalar_lea.smem [#allocation4], 2
          %1692 = sst [smem:[%s1691]] %s1646
          %s1693 = scalar_lea.smem [#allocation4], 3
          %1694 = sst [smem:[%s1693]] %s1686
          %v1695 = vld [vmem:[%s24] sm:$0xf]
          %v1696 = vld [vmem:[%s24 + $0x4] sm:$0xf]
          %v1697 = vpack.c.bf16 %v1462, %v1462
          %v1698 = vld [vmem:[%s25] sm:$0x1]
          %v1700 = vperm.slane %v1698, 0
          %v1704 = vunpack.c.l.b16 %v1695
          %v1705 = vunpack.c.l.b16 %v1696
          %v1706 = vpack.c.b16 %v1705, %v1704
          %v1709 = vsel %vm1486, %v1697, 0
          %1711 = vmatpush.bf16.msra.mxu0 0
          %1712 = vmatpush.bf16.msra.mxu0 0
          %1713 = vmatpush.bf16.msra.mxu0 0
          %1714 = vmatpush.bf16.msra.mxu0 0
          %1715 = vmatpush.bf16.msra.mxu0 0
          %1716 = vmatpush.bf16.msra.mxu0 0
          %1717 = vmatpush.bf16.msra.mxu0 0
          %1718 = vmatpush.bf16.msra.mxu0 %v1706
          %1719 = vmatmul.bf16.gmra.mxu0 %v1709
          %v1720 = vpop.f32.mrf.mxu0
          %v1721 = vadd.f32 %v1700, %v1720
          %v1722 = vpop.f32.mrf.mxu0
          %1723 = vdwg.mxu0
          %1724 = vmax.xlane.f32.xlu0 %v1721
          %v1725 = vpop.xlane.xlu0 %1724
          %v1726 = vsub.f32 %v1721, %v1725
          %v1727 = vmul.f32 %v1726, 1.442695
          %v1728 = vpow.pop %v1727
          %1729 = vadd.xlane.f32.xlu0 %v1728
          %v1730 = vpop.xlane.xlu0 %1729
          %v1731 = vlog2.pop %v1730
          %v1732 = vmul.f32 %v1731, 0.6931472
          %v1733 = vsub.f32 %v1726, %v1732
          %1734 = vst [vmem:[#allocation19] sm:$0xff] %v1733
        $region168: #{tpu_custom_call.1} parent=123 // pred_fallthru
          _
        // Predicated region
        $region169: #{tpu_custom_call.1} parent=123 // pred_check
          %p1735 = pneg %p1119
        $region170: #{tpu_custom_call.1} parent=123 // pred_check_branch
          %1737 = sbr.rel (%p1735) target = $region172
        $region171: #{tpu_custom_call.1} parent=123 // pred_region
          %v1738 = vld [vmem:[#allocation3] sm:$0xf]
          %v1739 = vld [vmem:[#allocation3 + $0x4] sm:$0xf]
          %v1740 = vld [vmem:[%s887] sm:$0xf]
          %v1741 = vld [vmem:[%s887 + $0x4] sm:$0xf]
          %v1742 = vld [vmem:[%s887 + $0x8] sm:$0xf]
          %v1743 = vld [vmem:[%s887 + $0xc] sm:$0xf]
          %v1744 = vld [vmem:[%s887 + $0x10] sm:$0xf]
          %v1745 = vld [vmem:[%s887 + $0x14] sm:$0xf]
          %v1746 = vld [vmem:[%s887 + $0x18] sm:$0xf]
          %v1747 = vld [vmem:[%s887 + $0x1c] sm:$0xf]
          %v1748 = vld [vmem:[%s887 + $0x20] sm:$0xf]
          %v1749 = vld [vmem:[%s887 + $0x24] sm:$0xf]
          %v1750 = vld [vmem:[%s887 + $0x28] sm:$0xf]
          %v1751 = vld [vmem:[%s887 + $0x2c] sm:$0xf]
          %v1752 = vld [vmem:[%s887 + $0x30] sm:$0xf]
          %v1753 = vld [vmem:[%s887 + $0x34] sm:$0xf]
          %v1754 = vld [vmem:[%s887 + $0x38] sm:$0xf]
          %v1755 = vld [vmem:[%s887 + $0x3c] sm:$0xf]
          %v1756 = vld [vmem:[%s896] sm:$0x1]
          %v1758 = vperm.slane %v1756, 0
          %v1762 = vunpack.c.l.b16 %v1738
          %v1763 = vunpack.c.l.b16 %v1739
          %v1764 = vpack.c.b16 %v1763, %v1762
          %v1782 = vunpack.c.l.b16 %v1740
          %v1783 = vunpack.c.l.b16 %v1741
          %v1784 = vunpack.c.l.b16 %v1742
          %v1785 = vunpack.c.l.b16 %v1743
          %v1786 = vunpack.c.l.b16 %v1744
          %v1787 = vunpack.c.l.b16 %v1745
          %v1788 = vunpack.c.l.b16 %v1746
          %v1789 = vunpack.c.l.b16 %v1747
          %v1790 = vunpack.c.l.b16 %v1748
          %v1791 = vunpack.c.l.b16 %v1749
          %v1792 = vunpack.c.l.b16 %v1750
          %v1793 = vunpack.c.l.b16 %v1751
          %v1794 = vunpack.c.l.b16 %v1752
          %v1795 = vunpack.c.l.b16 %v1753
          %v1796 = vunpack.c.l.b16 %v1754
          %v1797 = vunpack.c.l.b16 %v1755
          %v1798 = vpack.c.b16 %v1783, %v1782
          %v1799 = vpack.c.b16 %v1785, %v1784
          %v1800 = vpack.c.b16 %v1787, %v1786
          %v1801 = vpack.c.b16 %v1789, %v1788
          %v1802 = vpack.c.b16 %v1791, %v1790
          %v1803 = vpack.c.b16 %v1793, %v1792
          %v1804 = vpack.c.b16 %v1795, %v1794
          %v1805 = vpack.c.b16 %v1797, %v1796
          %1814 = vmatpush.bf16.msra.mxu0 %v1805
          %1815 = vmatpush.bf16.msra.mxu0 %v1804
          %1816 = vmatpush.bf16.msra.mxu0 %v1803
          %1817 = vmatpush.bf16.msra.mxu0 %v1802
          %1818 = vmatpush.bf16.msra.mxu0 %v1801
          %1819 = vmatpush.bf16.msra.mxu0 %v1800
          %1820 = vmatpush.bf16.msra.mxu0 %v1799
          %1821 = vmatpush.bf16.msra.mxu0 %v1798
          %1822 = vmatmul.bf16.gmra.mxu0 %v1764
          %v1823 = vpop.f32.mrf.mxu0
          %v1824 = vadd.f32 %v1758, %v1823
          %v1825 = vpop.f32.mrf.mxu0
          %v1826 = vadd.f32 %v1758, %v1825
          %1827 = vdwg.mxu0
          %v1828 = vld [vmem:[%s1012] sm:$0xff]
          %s1829 = sld [smem:[#allocation4]]
          %v1830 = vsub.f32 %v1824, %v1828
          %v1831 = vmul.f32 %v1830, %v1830
          %1832 = vadd.xlane.f32.xlu0 %v1831
          %v1833 = vpop.xlane.xlu0 %1832
          %v1834 = vrot.slane %v1833, 4
          %v1835 = vadd.f32 %v1833, %v1834
          %v1836 = vrot.slane %v1835, 2
          %v1837 = vadd.f32 %v1835, %v1836
          %v1838 = vrot.slane %v1837, 1
          %v1839 = vadd.f32 %v1837, %v1838
          %s1840 = vtos %v1839
          %s1841 = sadd.f32 %s1829, %s1840
          %s1842 = scalar_lea.smem [#allocation4], 0
          %1843 = sst [smem:[%s1842]] %s1841
          %s1844 = sld [smem:[#allocation4 + $0x1]]
          %v1845 = vsub.f32 %v1826, %v1828
          %v1846 = vmul.f32 %v1845, %v1845
          %1847 = vadd.xlane.f32.xlu0 %v1846
          %v1848 = vpop.xlane.xlu0 %1847
          %v1849 = vrot.slane %v1848, 4
          %v1850 = vadd.f32 %v1848, %v1849
          %v1851 = vrot.slane %v1850, 2
          %v1852 = vadd.f32 %v1850, %v1851
          %v1853 = vrot.slane %v1852, 1
          %v1854 = vadd.f32 %v1852, %v1853
          %s1855 = vtos %v1854
          %s1856 = sadd.f32 %s1844, %s1855
          %s1857 = scalar_lea.smem [#allocation4], 1
          %1858 = sst [smem:[%s1857]] %s1856
          %p1859 = scmp.eq.s32.totalorder %s55, 1
          // Predicated region
          $region173: #{tpu_custom_call.1} parent=171 // pred_check
            %p1860 = pneg %p1859
          $region174: #{tpu_custom_call.1} parent=171 // pred_check_branch
            %1862 = sbr.rel (%p1860) target = $region176
          $region175: #{tpu_custom_call.1} parent=171 // pred_region
            %v1863 = vlaneseq
            %v1864 = vand.u32 %v1863, 127
            %vm1865 = vcmp.eq.s32.totalorder %v1864, 0
            %s1866 = sld [smem:[#allocation4]]
            %v1867 = vstv %s1866
            %v1868 = vsel %vm1865, %v1867, 0.0
            %vm1869 = vcmp.eq.s32.totalorder %v1864, 1
            %s1870 = sld [smem:[#allocation4 + $0x1]]
            %v1871 = vstv %s1870
            %v1872 = vsel %vm1869, %v1871, 0.0
            %v1873 = vadd.f32 %v1868, %v1872
            %vm1874 = vcmp.eq.s32.totalorder %v1864, 2
            %s1875 = sld [smem:[#allocation4 + $0x2]]
            %v1876 = vstv %s1875
            %v1877 = vsel %vm1874, %v1876, 0.0
            %v1878 = vadd.f32 %v1873, %v1877
            %vm1879 = vcmp.eq.s32.totalorder %v1864, 3
            %s1880 = sld [smem:[#allocation4 + $0x3]]
            %v1881 = vstv %s1880
            %v1882 = vsel %vm1879, %v1881, 0.0
            %v1883 = vadd.f32 %v1878, %v1882
            %1884 = vst [vmem:[#allocation20] sm:$0x1] %v1883
          $region176: #{tpu_custom_call.1} parent=171 // pred_fallthru
            _
        $region172: #{tpu_custom_call.1} parent=123 // pred_fallthru
          _
        // Predicated region
        $region177: #{tpu_custom_call.1} parent=123 // pred_check
          %p1885 = pneg %p651
        $region178: #{tpu_custom_call.1} parent=123 // pred_check_branch
          %1887 = sbr.rel (%p1885) target = $region180
        $region179: #{tpu_custom_call.1} parent=123 // pred_region
          %1889 = vsyncadd [#allocation7], 0
          %s1891 = sshll.u32 [#allocation19], 4
          %s1892 = int_to_ptr.vmem [resolvable:$true] %s1891
          %s1893 = sshll.u32 %s26, 4
          %s1894 = int_to_ptr.hbm [resolvable:$true] %s1893
          %1896 = dma.vmem_to_hbm [thread:$0]  %s1892, 128, %s1894, [#allocation7]
        $region180: #{tpu_custom_call.1} parent=123 // pred_fallthru
          _
        // Predicated region
        $region181: #{tpu_custom_call.1} parent=123 // pred_check
          %p1897 = pneg %p672
        $region182: #{tpu_custom_call.1} parent=123 // pred_check_branch
          %1899 = sbr.rel (%p1897) target = $region184
        $region183: #{tpu_custom_call.1} parent=123 // pred_region
          %1901 = vsyncadd [#allocation21], 0
          %s1903 = sshll.u32 [#allocation20], 4
          %s1904 = int_to_ptr.vmem [resolvable:$true] %s1903
          %s1905 = sshll.u32 %s27, 4
          %s1906 = int_to_ptr.hbm [resolvable:$true] %s1905
          %1908 = dma.vmem_to_hbm [thread:$0]  %s1904, 16, %s1906, [#allocation21]
        $region184: #{tpu_custom_call.1} parent=123 // pred_fallthru
          _
        // Predicated region
        $region185: #{tpu_custom_call.1} parent=123 // pred_check
          %p1909 = pneg %p651
        $region186: #{tpu_custom_call.1} parent=123 // pred_check_branch
          %1911 = sbr.rel (%p1909) target = $region188
        $region187: #{tpu_custom_call.1} parent=123 // pred_region
          %1913 = dma.done [#allocation7], 128
        $region188: #{tpu_custom_call.1} parent=123 // pred_fallthru
          _
        // Predicated region
        $region189: #{tpu_custom_call.1} parent=123 // pred_check
          %p1914 = pneg %p672
        $region190: #{tpu_custom_call.1} parent=123 // pred_check_branch
          %1916 = sbr.rel (%p1914) target = $region192
        $region191: #{tpu_custom_call.1} parent=123 // pred_region
          %1918 = dma.done [#allocation21], 16
        $region192: #{tpu_custom_call.1} parent=123 // pred_fallthru
          _
      $region124: #{tpu_custom_call.1} parent=5 // pred_fallthru
        _
      %p1919 = scmp.le.s32.totalorder 2, %s45
      // Predicated region
      $region193: #{tpu_custom_call.1} parent=5 // pred_check
        %p1920 = pneg %p1919
      $region194: #{tpu_custom_call.1} parent=5 // pred_check_branch
        %1922 = sbr.rel (%p1920) target = $region196
      $region195: #{tpu_custom_call.1} parent=5 // pred_region
        %s1923 = ssub.s32 %s45, 2
      $region196: #{tpu_custom_call.1} parent=5 // pred_fallthru
        _
    $region6: #{tpu_custom_call.1} parent=1 // loop_footer
      %s49 = sadd.s32 1, %s45
    $region7: #{tpu_custom_call.1} parent=1 // loop_footer_branch
      %44 = sbr.rel target = $region3
    $region8: #{tpu_custom_call.1} parent=1 // loop_exit
      _
    %1924 = vsyncpa [#allocation6], 1
    %s1925 = scalar_lea.sflag [#allocation6], 1
    %1926 = vsyncpa %s1925, 1
    %1927 = vsyncpa [#allocation9], 1
    %s1928 = scalar_lea.sflag [#allocation9], 1
    %1929 = vsyncpa %s1928, 1
    %1930 = vsyncpa [#allocation12], 1
    %1931 = vsyncpa [#allocation15], 1
    %1932 = vsyncpa [#allocation18], 1
    %1933 = vsyncpa [#allocation7], 1
    %s1934 = scalar_lea.sflag [#allocation7], 1
    %1935 = vsyncpa %s1934, 1
    %1936 = vsyncpa [#allocation21], 1

</llo_original>
